<compile_context>
chip_gen: v7x
topology: tpu7x:2x2x1
jax: 0.10.0
libtpu: 0.0.40
codegen_flags: <defaults>
</compile_context>

<pallas_src>
import functools

import jax
import jax.numpy as jnp
from jax.experimental import pallas as pl
from jax.experimental.pallas import tpu as pltpu

LANE = 128
DEFAULT_BATCH_TILE = 32            # per-generation knob; 32-64 amortizes step overhead
VMEM_LIMIT_BYTES = 48 * 1024 * 1024


def _round_up(x, m):
    return m * pl.cdiv(x, m)


# ---------------------------------------------------------------------------
# Kernel bodies
# ---------------------------------------------------------------------------
def _mlp(x_f32, w1, b1, w2, b2, w3, b3):
    """3-layer classifier: bf16 MXU inputs, f32 accumulation + f32 elementwise."""
    h1 = jnp.dot(x_f32.astype(jnp.bfloat16), w1,
                 preferred_element_type=jnp.float32) + b1
    h1 = jnp.maximum(h1, 0.0)
    h2 = jnp.dot(h1.astype(jnp.bfloat16), w2,
                 preferred_element_type=jnp.float32) + b2
    h2 = jnp.maximum(h2, 0.0)
    return jnp.dot(h2.astype(jnp.bfloat16), w3,
                   preferred_element_type=jnp.float32) + b3


def _ocn_train_kernel(feat_ref, noise_ref, w1_ref, b1_ref, w2_ref, b2_ref,
                      w3_ref, b3_ref, o_feat_ref, o_noise_ref, *, inv_hw, tb):
    # AdaptiveAvgPool2d(1): feature tile is (TB, HW, C) with C on lanes, so the mean
    # is a sublane reduce; accumulate in f32 even though features stream as bf16.
    pooled = jnp.sum(feat_ref[...].astype(jnp.float32), axis=1) * inv_hw   # (TB, C)
    # Virtual torch.cat((x, gaussian)) followed by the train-branch ReLU.
    x = jnp.concatenate([pooled, noise_ref[...].astype(jnp.float32)], axis=0)
    x = jnp.maximum(x, 0.0)                                   # self.relu(x)
    logits = _mlp(x, w1_ref[...], b1_ref[...], w2_ref[...], b2_ref[...],
                  w3_ref[...], b3_ref[...])                   # (2*TB, NC_pad) f32
    o_feat_ref[...] = logits[:tb]
    o_noise_ref[...] = logits[tb:]


def _ocn_eval_kernel(feat_ref, w1_ref, b1_ref, w2_ref, b2_ref, w3_ref, b3_ref,
                     o_ref, *, inv_hw):
    pooled = jnp.sum(feat_ref[...].astype(jnp.float32), axis=1) * inv_hw
    o_ref[...] = _mlp(pooled, w1_ref[...], b1_ref[...], w2_ref[...],
                      b2_ref[...], w3_ref[...], b3_ref[...])


# ---------------------------------------------------------------------------
# Parameter init (deterministic, PyTorch nn.Linear default init style)
# ---------------------------------------------------------------------------
def init_ocn_params(key, num_classes):
    keys = jax.random.split(key, 6)

    def lin(kw, kb, fan_in, fan_out):
        bound = 1.0 / (fan_in ** 0.5)
        w = jax.random.uniform(kw, (fan_in, fan_out), jnp.float32, -bound, bound)
        b = jax.random.uniform(kb, (fan_out,), jnp.float32, -bound, bound)
        return w, b

    w1, b1 = lin(keys[0], keys[1], 1280, 256)
    w2, b2 = lin(keys[2], keys[3], 256, 128)
    w3, b3 = lin(keys[4], keys[5], 128, num_classes)
    return (w1, b1, w2, b2, w3, b3)


def _prep_classifier_params(params, num_classes):
    """bf16 weights (half the DMA), f32 biases, lane-padded final layer."""
    w1, b1, w2, b2, w3, b3 = params
    nc_pad = LANE * pl.cdiv(num_classes, LANE)
    w3p = jnp.zeros((w3.shape[0], nc_pad), jnp.float32).at[:, :num_classes].set(w3)
    b3p = jnp.zeros((nc_pad,), jnp.float32).at[:num_classes].set(b3)
    return (w1.astype(jnp.bfloat16), b1.reshape(1, -1).astype(jnp.float32),
            w2.astype(jnp.bfloat16), b2.reshape(1, -1).astype(jnp.float32),
            w3p.astype(jnp.bfloat16), b3p.reshape(1, -1), nc_pad)


def _weight_specs(*weights):
    # Constant index map -> same block every grid step, so the weights stay
    # VMEM-resident while the feature tiles stream (no per-step re-DMA).
    const = lambda i: (0, 0)
    return [pl.BlockSpec(w.shape, const) for w in weights]


def _tile_plan(batch, batch_tile):
    """Pick (tb, b_pad, n_tiles): large tiles, minimal padding, >=2 tiles when possible
    so v7x can shard the parallel batch axis across both TensorCores."""
    b_pad8 = _round_up(batch, 8)
    n_tiles = pl.cdiv(b_pad8, batch_tile)
    if b_pad8 > 8:
        n_tiles = max(n_tiles, 2)
    tb = _round_up(pl.cdiv(b_pad8, n_tiles), 8)
    b_pad = n_tiles * tb
    return tb, b_pad, n_tiles


# ---------------------------------------------------------------------------
# OCN forward (head): fused pool + train branch + classifier
# ---------------------------------------------------------------------------
def ocn_forward(feat_nchw, labels, params, batch_size, *, is_train=True, rng=None,
                batch_tile=DEFAULT_BATCH_TILE):
    """OCN.forward from the backbone feature map onward.

    feat_nchw: (B, 1280, H, W) backbone output, NCHW exactly like PyTorch.
    """
    B, C, H, W = feat_nchw.shape
    HW = H * W
    # Layout fix: put C (=1280 = 10*128) on the lane axis, HW on sublanes, and stream
    # the features in bf16.  One XLA transpose/cast pass outside the kernel is far
    # cheaper than running the mem-bound kernel with an 8x lane-padded tile.
    feat = (feat_nchw.astype(jnp.bfloat16)
            .reshape(B, C, HW).transpose(0, 2, 1))            # (B, HW, C) bf16

    num_classes = params[4].shape[1]
    w1, b1, w2, b2, w3, b3, nc_pad = _prep_classifier_params(params, num_classes)
    inv_hw = 1.0 / float(HW)

    tb, b_pad, n_tiles = _tile_plan(B, batch_tile)
    if b_pad != B:
        feat = jnp.pad(feat, ((0, b_pad - B), (0, 0), (0, 0)))

    grid = (n_tiles,)
    feat_spec = pl.BlockSpec((tb, HW, C), lambda i: (i, 0, 0))
    out_spec = pl.BlockSpec((tb, nc_pad), lambda i: (i, 0))
    w_specs = _weight_specs(w1, b1, w2, b2, w3, b3)
    cparams = pltpu.CompilerParams(
        dimension_semantics=("parallel",),
        vmem_limit_bytes=VMEM_LIMIT_BYTES,
    )

    weight_bytes = sum(int(a.size) * a.dtype.itemsize
                       for a in (w1, b1, w2, b2, w3, b3))
    mlp_flops_per_row = 2 * (1280 * 256 + 256 * 128 + 128 * nc_pad)

    if is_train:
        k_noise, k_perm = jax.random.split(rng)
        # torch.normal(0, 0.1, x.shape): std-0.1 gaussian rows (tiny vs feature stream).
        noise = 0.1 * jax.random.normal(k_noise, (B, C), jnp.float32)
        if b_pad != B:
            noise = jnp.pad(noise, ((0, b_pad - B), (0, 0)))
        noise_spec = pl.BlockSpec((tb, C), lambda i: (i, 0))

        rows = 2 * b_pad
        cost = pl.CostEstimate(
            flops=rows * mlp_flops_per_row + b_pad * C * HW,
            transcendentals=0,
            bytes_accessed=(int(feat.size) * 2 + int(noise.size) * 4
                            + weight_bytes + rows * nc_pad * 4),
        )

        kernel = functools.partial(_ocn_train_kernel, inv_hw=inv_hw, tb=tb)
        logits_feat, logits_noise = pl.pallas_call(
            kernel,
            grid=grid,
            in_specs=[feat_spec, noise_spec] + w_specs,
            out_specs=(out_spec, out_spec),
            out_shape=(jax.ShapeDtypeStruct((b_pad, nc_pad), jnp.float32),
                       jax.ShapeDtypeStruct((b_pad, nc_pad), jnp.float32)),
            compiler_params=cparams,
            cost_estimate=cost,
        )(feat, noise, w1, b1, w2, b2, w3, b3)

        # Strip batch/lane padding, rebuild the torch.cat((x, gaussian)) row order.
        logits = jnp.concatenate([logits_feat[:B, :num_classes],
                                  logits_noise[:B, :num_classes]], axis=0)
        # Gaussian rows carry label 0, exactly like self.labels = torch.zeros(...).long().
        labels_cat = jnp.concatenate(
            [labels, jnp.zeros((batch_size,), labels.dtype)], axis=0)
        # Row shuffle: the head is strictly row-wise, so permuting logits/labels after
        # the kernel is identical to permuting the activations before it.
        perm = jax.random.permutation(k_perm, logits.shape[0])
        return logits[perm], labels_cat[perm]

    cost = pl.CostEstimate(
        flops=b_pad * mlp_flops_per_row + b_pad * C * HW,
        transcendentals=0,
        bytes_accessed=int(feat.size) * 2 + weight_bytes + b_pad * nc_pad * 4,
    )
    kernel = functools.partial(_ocn_eval_kernel, inv_hw=inv_hw)
    logits = pl.pallas_call(
        kernel,
        grid=grid,
        in_specs=[feat_spec] + w_specs,
        out_specs=out_spec,
        out_shape=jax.ShapeDtypeStruct((b_pad, nc_pad), jnp.float32),
        compiler_params=cparams,
        cost_estimate=cost,
    )(feat, w1, b1, w2, b2, w3, b3)
    return logits[:B, :num_classes], labels


if __name__ == "__main__":
    key = jax.random.PRNGKey(0)
    k_feat, k_params, k_fwd = jax.random.split(key, 3)

    # Small shapes consistent with the module: backbone emits 1280 channels.
    B, C, H, W = 2, 1280, 4, 4
    num_classes = 10

    feat = jax.random.normal(k_feat, (B, C, H, W), jnp.float32)
    labels = jnp.arange(B, dtype=jnp.int32) % num_classes   # torch long -> int32
    params = init_ocn_params(k_params, num_classes)

    # Train branch (noise rows + shuffle + ReLU + classifier).
    logits, out_labels = ocn_forward(feat, labels, params, B,
                                     is_train=True, rng=k_fwd)
    jax.block_until_ready((logits, out_labels))
    assert logits.shape == (2 * B, num_classes)
    assert out_labels.shape == (2 * B,)

    # Eval branch (pool + classifier only).
    logits_eval, labels_eval = ocn_forward(feat, labels, params, B, is_train=False)
    jax.block_until_ready((logits_eval, labels_eval))
    assert logits_eval.shape == (B, num_classes)
    assert labels_eval.shape == (B,)

    print("KERNEL_OK")
</pallas_src>

<mosaic_0001>
module attributes {stable_mosaic.version = 11 : i64} {
  func.func @_ocn_train_kernel(%arg0: i32, %arg1: memref<8x16x1280xbf16, #tpu.memory_space<vmem>>, %arg2: memref<8x1280xf32, #tpu.memory_space<vmem>>, %arg3: memref<1280x256xbf16, #tpu.memory_space<vmem>>, %arg4: memref<1x256xf32, #tpu.memory_space<vmem>>, %arg5: memref<256x128xbf16, #tpu.memory_space<vmem>>, %arg6: memref<1x128xf32, #tpu.memory_space<vmem>>, %arg7: memref<128x128xbf16, #tpu.memory_space<vmem>>, %arg8: memref<1x128xf32, #tpu.memory_space<vmem>>, %arg9: memref<8x128xf32, #tpu.memory_space<vmem>>, %arg10: memref<8x128xf32, #tpu.memory_space<vmem>>) attributes {dimension_semantics = [#tpu.dimension_semantics<parallel>], iteration_bounds = array<i64: 1>, scalar_prefetch = 0 : i64, scratch_operands = 0 : i64, tpu.core_type = #tpu.core_type<tc>, window_params = [{transform_indices = @transform_0, window_bounds = array<i64: 8, 16, 1280>}, {transform_indices = @transform_1, window_bounds = array<i64: 8, 1280>}, {pipeline_mode = #tpu.pipeline_mode<synchronous>, transform_indices = @transform_2, window_bounds = array<i64: 1280, 256>}, {pipeline_mode = #tpu.pipeline_mode<synchronous>, transform_indices = @transform_3, window_bounds = array<i64: 1, 256>}, {pipeline_mode = #tpu.pipeline_mode<synchronous>, transform_indices = @transform_4, window_bounds = array<i64: 256, 128>}, {pipeline_mode = #tpu.pipeline_mode<synchronous>, transform_indices = @transform_5, window_bounds = array<i64: 1, 128>}, {pipeline_mode = #tpu.pipeline_mode<synchronous>, transform_indices = @transform_6, window_bounds = array<i64: 128, 128>}, {pipeline_mode = #tpu.pipeline_mode<synchronous>, transform_indices = @transform_7, window_bounds = array<i64: 1, 128>}, {transform_indices = @transform_8, window_bounds = array<i64: 8, 128>}, {transform_indices = @transform_9, window_bounds = array<i64: 8, 128>}]} {
    %c0 = arith.constant 0 : index
    %c0_0 = arith.constant 0 : index
    %c0_1 = arith.constant 0 : index
    %0 = vector.load %arg1[%c0, %c0_0, %c0_1] : memref<8x16x1280xbf16, #tpu.memory_space<vmem>>, vector<8x16x1280xbf16>
    %1 = arith.extf %0 : vector<8x16x1280xbf16> to vector<8x16x1280xf32>
    %cst = arith.constant dense<0.000000e+00> : vector<8x1280xf32>
    %2 = vector.multi_reduction <add>, %1, %cst [1] : vector<8x16x1280xf32> to vector<8x1280xf32>
    %cst_2 = arith.constant 6.250000e-02 : f32
    %3 = vector.broadcast %cst_2 : f32 to vector<8x1280xf32>
    %4 = arith.mulf %2, %3 : vector<8x1280xf32>
    %c0_3 = arith.constant 0 : index
    %c0_4 = arith.constant 0 : index
    %5 = vector.load %arg2[%c0_3, %c0_4] : memref<8x1280xf32, #tpu.memory_space<vmem>>, vector<8x1280xf32>
    %6 = tpu.concatenate %4, %5 in 0 : vector<8x1280xf32>, vector<8x1280xf32> -> vector<16x1280xf32>
    %cst_5 = arith.constant 0.000000e+00 : f32
    %7 = vector.broadcast %cst_5 : f32 to vector<16x1280xf32>
    %8 = arith.maximumf %6, %7 : vector<16x1280xf32>
    %c0_6 = arith.constant 0 : index
    %c0_7 = arith.constant 0 : index
    %9 = vector.load %arg3[%c0_6, %c0_7] : memref<1280x256xbf16, #tpu.memory_space<vmem>>, vector<1280x256xbf16>
    %c0_8 = arith.constant 0 : index
    %c0_9 = arith.constant 0 : index
    %10 = vector.load %arg4[%c0_8, %c0_9] : memref<1x256xf32, #tpu.memory_space<vmem>>, vector<1x256xf32>
    %c0_10 = arith.constant 0 : index
    %c0_11 = arith.constant 0 : index
    %11 = vector.load %arg5[%c0_10, %c0_11] : memref<256x128xbf16, #tpu.memory_space<vmem>>, vector<256x128xbf16>
    %c0_12 = arith.constant 0 : index
    %c0_13 = arith.constant 0 : index
    %12 = vector.load %arg6[%c0_12, %c0_13] : memref<1x128xf32, #tpu.memory_space<vmem>>, vector<1x128xf32>
    %c0_14 = arith.constant 0 : index
    %c0_15 = arith.constant 0 : index
    %13 = vector.load %arg7[%c0_14, %c0_15] : memref<128x128xbf16, #tpu.memory_space<vmem>>, vector<128x128xbf16>
    %c0_16 = arith.constant 0 : index
    %c0_17 = arith.constant 0 : index
    %14 = vector.load %arg8[%c0_16, %c0_17] : memref<1x128xf32, #tpu.memory_space<vmem>>, vector<1x128xf32>
    %15 = arith.truncf %8 : vector<16x1280xf32> to vector<16x1280xbf16>
    %cst_18 = arith.constant dense<0.000000e+00> : vector<16x256xf32>
    %16 = tpu.matmul %15, %9, %cst_18 {dimension_numbers = #tpu.dot_dimension_numbers<[1], [0], [0], [1], [0, 0, 1, 1], [], []>} : vector<16x1280xbf16>, vector<1280x256xbf16>, vector<16x256xf32> -> vector<16x256xf32>
    %17 = vector.broadcast %10 : vector<1x256xf32> to vector<16x256xf32>
    %18 = arith.addf %16, %17 : vector<16x256xf32>
    %cst_19 = arith.constant 0.000000e+00 : f32
    %19 = vector.broadcast %cst_19 : f32 to vector<16x256xf32>
    %20 = arith.maximumf %18, %19 : vector<16x256xf32>
    %21 = arith.truncf %20 : vector<16x256xf32> to vector<16x256xbf16>
    %cst_20 = arith.constant dense<0.000000e+00> : vector<16x128xf32>
    %22 = tpu.matmul %21, %11, %cst_20 {dimension_numbers = #tpu.dot_dimension_numbers<[1], [0], [0], [1], [0, 0, 1, 1], [], []>} : vector<16x256xbf16>, vector<256x128xbf16>, vector<16x128xf32> -> vector<16x128xf32>
    %23 = vector.broadcast %12 : vector<1x128xf32> to vector<16x128xf32>
    %24 = arith.addf %22, %23 : vector<16x128xf32>
    %cst_21 = arith.constant 0.000000e+00 : f32
    %25 = vector.broadcast %cst_21 : f32 to vector<16x128xf32>
    %26 = arith.maximumf %24, %25 : vector<16x128xf32>
    %27 = arith.truncf %26 : vector<16x128xf32> to vector<16x128xbf16>
    %cst_22 = arith.constant dense<0.000000e+00> : vector<16x128xf32>
    %28 = tpu.matmul %27, %13, %cst_22 {dimension_numbers = #tpu.dot_dimension_numbers<[1], [0], [0], [1], [0, 0, 1, 1], [], []>} : vector<16x128xbf16>, vector<128x128xbf16>, vector<16x128xf32> -> vector<16x128xf32>
    %29 = vector.broadcast %14 : vector<1x128xf32> to vector<16x128xf32>
    %30 = arith.addf %28, %29 : vector<16x128xf32>
    %31 = vector.extract_strided_slice %30 {offsets = [0, 0], sizes = [8, 128], strides = [1, 1]} : vector<16x128xf32> to vector<8x128xf32>
    %c0_23 = arith.constant 0 : index
    %c0_24 = arith.constant 0 : index
    %32 = vector.load %arg9[%c0_23, %c0_24] : memref<8x128xf32, #tpu.memory_space<vmem>>, vector<8x128xf32>
    tpu.vector_store %arg9[%c0_23, %c0_24], %31 {strides = array<i32>} : memref<8x128xf32, #tpu.memory_space<vmem>>, vector<8x128xf32>,
    %33 = vector.extract_strided_slice %30 {offsets = [8, 0], sizes = [8, 128], strides = [1, 1]} : vector<16x128xf32> to vector<8x128xf32>
    %c0_25 = arith.constant 0 : index
    %c0_26 = arith.constant 0 : index
    %34 = vector.load %arg10[%c0_25, %c0_26] : memref<8x128xf32, #tpu.memory_space<vmem>>, vector<8x128xf32>
    tpu.vector_store %arg10[%c0_25, %c0_26], %33 {strides = array<i32>} : memref<8x128xf32, #tpu.memory_space<vmem>>, vector<8x128xf32>,
    return
  }
  func.func @transform_0(%arg0: i32) -> (i32, i32, i32) {
    %c0_i32 = arith.constant 0 : i32
    %c0_i32_0 = arith.constant 0 : i32
    %c0_i32_1 = arith.constant 0 : i32
    return %arg0, %c0_i32, %c0_i32_0 : i32, i32, i32
  }
  func.func @transform_1(%arg0: i32) -> (i32, i32) {
    %c0_i32 = arith.constant 0 : i32
    %c0_i32_0 = arith.constant 0 : i32
    return %arg0, %c0_i32 : i32, i32
  }
  func.func @transform_2(%arg0: i32) -> (i32, i32) {
    %c0_i32 = arith.constant 0 : i32
    %c0_i32_0 = arith.constant 0 : i32
    %c0_i32_1 = arith.constant 0 : i32
    return %c0_i32, %c0_i32_0 : i32, i32
  }
  func.func @transform_3(%arg0: i32) -> (i32, i32) {
    %c0_i32 = arith.constant 0 : i32
    %c0_i32_0 = arith.constant 0 : i32
    %c0_i32_1 = arith.constant 0 : i32
    return %c0_i32, %c0_i32_0 : i32, i32
  }
  func.func @transform_4(%arg0: i32) -> (i32, i32) {
    %c0_i32 = arith.constant 0 : i32
    %c0_i32_0 = arith.constant 0 : i32
    %c0_i32_1 = arith.constant 0 : i32
    return %c0_i32, %c0_i32_0 : i32, i32
  }
  func.func @transform_5(%arg0: i32) -> (i32, i32) {
    %c0_i32 = arith.constant 0 : i32
    %c0_i32_0 = arith.constant 0 : i32
    %c0_i32_1 = arith.constant 0 : i32
    return %c0_i32, %c0_i32_0 : i32, i32
  }
  func.func @transform_6(%arg0: i32) -> (i32, i32) {
    %c0_i32 = arith.constant 0 : i32
    %c0_i32_0 = arith.constant 0 : i32
    %c0_i32_1 = arith.constant 0 : i32
    return %c0_i32, %c0_i32_0 : i32, i32
  }
  func.func @transform_7(%arg0: i32) -> (i32, i32) {
    %c0_i32 = arith.constant 0 : i32
    %c0_i32_0 = arith.constant 0 : i32
    %c0_i32_1 = arith.constant 0 : i32
    return %c0_i32, %c0_i32_0 : i32, i32
  }
  func.func @transform_8(%arg0: i32) -> (i32, i32) {
    %c0_i32 = arith.constant 0 : i32
    %c0_i32_0 = arith.constant 0 : i32
    return %arg0, %c0_i32 : i32, i32
  }
  func.func @transform_9(%arg0: i32) -> (i32, i32) {
    %c0_i32 = arith.constant 0 : i32
    %c0_i32_0 = arith.constant 0 : i32
    return %arg0, %c0_i32 : i32, i32
  }
}

</mosaic_0001>

<llo_original>
// kernel: tpu_custom_call.1
$region0: #{tpu_custom_call.1}
  #allocation0 [shape = 'u32[]', space=smem, size = 0x4, offset = 0x4, fixed_abs, tag = 'smem constant byte address 0x4 - core index']
  #allocation1 [shape = 'u32[144,128]{1,0:T(1,128)}', space=vmem, size = 0x12000, scoped, tag = 'internal scratch']
  %s0 = inlined_call_operand.hbm [shape: bf16[8,16,1280], index: 0, kind: input, shape index: {}]
  %s1 = inlined_call_operand.hbm [shape: f32[8,1280], index: 1, kind: input, shape index: {}]
  %s2 = inlined_call_operand.hbm [shape: bf16[1280,256], index: 2, kind: input, shape index: {}]
  %s3 = inlined_call_operand.vmem [shape: f32[1,256], index: 3, kind: input, shape index: {}]
  %s4 = inlined_call_operand.hbm [shape: bf16[256,128], index: 4, kind: input, shape index: {}]
  %s5 = inlined_call_operand.vmem [shape: f32[1,128], index: 5, kind: input, shape index: {}]
  %s6 = inlined_call_operand.hbm [shape: bf16[128,128], index: 6, kind: input, shape index: {}]
  %s7 = inlined_call_operand.vmem [shape: f32[1,128], index: 7, kind: input, shape index: {}]
  %s8 = inlined_call_operand.hbm [shape: f32[8,128], index: 8, kind: output, shape index: {0}]
  %s9 = inlined_call_operand.hbm [shape: f32[8,128], index: 9, kind: output, shape index: {1}]
  %10 = xla_tuple %s8, %s9
  %s11 = sld [smem:[#allocation0]]
  $region70: #{tpu_custom_call.1} parent=0
    _
  %s13 = ssub.s32 1, %s11
  %s14 = scalar_select 0, %s13, %s11
  $region1: #{tpu_custom_call.1} parent=0
    #allocation2 [shape = 'u8[327680]{0}', space=vmem, size = 0x50000, scoped, tag = 'input window, operand 0, single buffered']
    #allocation3 [shape = 's32[1]{0}', space=sflag, size = 0x4, scoped, tag = 'scoped memory for tpu_custom_call.1']
    #allocation4 [shape = 's32[1]{0}', space=sflag, size = 0x4, scoped, tag = 'scoped memory for tpu_custom_call.1']
    #allocation5 [shape = 'u8[40960]{0}', space=vmem, size = 0xa000, scoped, tag = 'input window, operand 1, single buffered']
    #allocation6 [shape = 's32[1]{0}', space=sflag, size = 0x4, scoped, tag = 'scoped memory for tpu_custom_call.1']
    #allocation7 [shape = 'u8[655360]{0}', space=vmem, size = 0xa0000, scoped, tag = 'input window, operand 2, single buffered']
    #allocation8 [shape = 'u8[65536]{0}', space=vmem, size = 0x10000, scoped, tag = 'input window, operand 4, single buffered']
    #allocation9 [shape = 's32[1]{0}', space=sflag, size = 0x4, scoped, tag = 'scoped memory for tpu_custom_call.1']
    #allocation10 [shape = 'u8[32768]{0}', space=vmem, size = 0x8000, scoped, tag = 'input window, operand 6, single buffered']
    #allocation11 [shape = 'u8[4096]{0}', space=vmem, size = 0x1000, scoped, tag = 'output window, operand 0, single buffered']
    #allocation12 [shape = 'u8[4096]{0}', space=vmem, size = 0x1000, scoped, tag = 'output window, operand 1, single buffered']
    #allocation13 [shape = 's32[1]{0}', space=sflag, size = 0x4, scoped, tag = 'scoped memory for tpu_custom_call.1']
    %15 = vsyncpa [#allocation3], 0
    %16 = vsyncpa [#allocation6], 0
    %17 = vsyncpa [#allocation9], 0
    %18 = vsyncpa [#allocation4], 0
    %19 = vsyncpa [#allocation13], 0
    // Predicated region
    $region2: #{tpu_custom_call.1} parent=1 // pred_check
      _
    $region3: #{tpu_custom_call.1} parent=1 // pred_check_branch
      %21 = sbr.rel (0) target = $region5
    $region4: #{tpu_custom_call.1} parent=1 // pred_region
      %s23 = ssub.s32 10240, 10240
      %24 = vsyncadd [#allocation3], %s23
      %s25 = sshll.u32 [#allocation2], 4
      %s26 = int_to_ptr.vmem [resolvable:$true] %s25
      %31 = dma.hbm_to_vmem [thread:$0]  %s0, 10240, %s26, [#allocation3], 640, 640, 40
    $region5: #{tpu_custom_call.1} parent=1 // pred_fallthru
      _
    // Predicated region
    $region6: #{tpu_custom_call.1} parent=1 // pred_check
      _
    $region7: #{tpu_custom_call.1} parent=1 // pred_check_branch
      %33 = sbr.rel (0) target = $region9
    $region8: #{tpu_custom_call.1} parent=1 // pred_region
      %s35 = ssub.s32 1280, 1280
      %36 = vsyncadd [#allocation6], %s35
      %s38 = sshll.u32 [#allocation5], 4
      %s39 = int_to_ptr.vmem [resolvable:$true] %s38
      %41 = dma.hbm_to_vmem [thread:$0]  %s1, 1280, %s39, [#allocation6]
    $region9: #{tpu_custom_call.1} parent=1 // pred_fallthru
      _
    // Predicated region
    $region10: #{tpu_custom_call.1} parent=1 // pred_check
      _
    $region11: #{tpu_custom_call.1} parent=1 // pred_check_branch
      %43 = sbr.rel (0) target = $region13
    $region12: #{tpu_custom_call.1} parent=1 // pred_region
      %s45 = ssub.s32 20480, 20480
      %46 = vsyncadd [#allocation6], %s45
      %s47 = sshll.u32 [#allocation7], 4
      %s48 = int_to_ptr.vmem [resolvable:$true] %s47
      %53 = dma.hbm_to_vmem [thread:$0]  %s2, 20480, %s48, [#allocation6], 128, 128, 8
    $region13: #{tpu_custom_call.1} parent=1 // pred_fallthru
      _
    // Predicated region
    $region14: #{tpu_custom_call.1} parent=1 // pred_check
      _
    $region15: #{tpu_custom_call.1} parent=1 // pred_check_branch
      %55 = sbr.rel (0) target = $region17
    $region16: #{tpu_custom_call.1} parent=1 // pred_region
      _
    $region17: #{tpu_custom_call.1} parent=1 // pred_fallthru
      _
    // Predicated region
    $region18: #{tpu_custom_call.1} parent=1 // pred_check
      _
    $region19: #{tpu_custom_call.1} parent=1 // pred_check_branch
      %57 = sbr.rel (0) target = $region21
    $region20: #{tpu_custom_call.1} parent=1 // pred_region
      %s59 = ssub.s32 2048, 2048
      %60 = vsyncadd [#allocation9], %s59
      %s61 = sshll.u32 [#allocation8], 4
      %s62 = int_to_ptr.vmem [resolvable:$true] %s61
      %67 = dma.hbm_to_vmem [thread:$0]  %s4, 2048, %s62, [#allocation9], 64, 64, 4
    $region21: #{tpu_custom_call.1} parent=1 // pred_fallthru
      _
    // Predicated region
    $region22: #{tpu_custom_call.1} parent=1 // pred_check
      _
    $region23: #{tpu_custom_call.1} parent=1 // pred_check_branch
      %69 = sbr.rel (0) target = $region25
    $region24: #{tpu_custom_call.1} parent=1 // pred_region
      _
    $region25: #{tpu_custom_call.1} parent=1 // pred_fallthru
      _
    // Predicated region
    $region26: #{tpu_custom_call.1} parent=1 // pred_check
      _
    $region27: #{tpu_custom_call.1} parent=1 // pred_check_branch
      %71 = sbr.rel (0) target = $region29
    $region28: #{tpu_custom_call.1} parent=1 // pred_region
      %s73 = ssub.s32 1024, 1024
      %74 = vsyncadd [#allocation9], %s73
      %s75 = sshll.u32 [#allocation10], 4
      %s76 = int_to_ptr.vmem [resolvable:$true] %s75
      %81 = dma.hbm_to_vmem [thread:$0]  %s6, 1024, %s76, [#allocation9], 64, 64, 4
    $region29: #{tpu_custom_call.1} parent=1 // pred_fallthru
      _
    // Predicated region
    $region30: #{tpu_custom_call.1} parent=1 // pred_check
      _
    $region31: #{tpu_custom_call.1} parent=1 // pred_check_branch
      %83 = sbr.rel (0) target = $region33
    $region32: #{tpu_custom_call.1} parent=1 // pred_region
      _
    $region33: #{tpu_custom_call.1} parent=1 // pred_fallthru
      _
    // Predicated region
    $region34: #{tpu_custom_call.1} parent=1 // pred_check
      _
    $region35: #{tpu_custom_call.1} parent=1 // pred_check_branch
      %85 = sbr.rel (0) target = $region37
    $region36: #{tpu_custom_call.1} parent=1 // pred_region
      %86 = dma.done [#allocation3], 10240
    $region37: #{tpu_custom_call.1} parent=1 // pred_fallthru
      _
    // Predicated region
    $region38: #{tpu_custom_call.1} parent=1 // pred_check
      _
    $region39: #{tpu_custom_call.1} parent=1 // pred_check_branch
      %88 = sbr.rel (0) target = $region41
    $region40: #{tpu_custom_call.1} parent=1 // pred_region
      %89 = dma.done [#allocation6], 1280
    $region41: #{tpu_custom_call.1} parent=1 // pred_fallthru
      _
    // Predicated region
    $region42: #{tpu_custom_call.1} parent=1 // pred_check
      _
    $region43: #{tpu_custom_call.1} parent=1 // pred_check_branch
      %91 = sbr.rel (0) target = $region45
    $region44: #{tpu_custom_call.1} parent=1 // pred_region
      %92 = dma.done [#allocation6], 20480
    $region45: #{tpu_custom_call.1} parent=1 // pred_fallthru
      _
    // Predicated region
    $region46: #{tpu_custom_call.1} parent=1 // pred_check
      _
    $region47: #{tpu_custom_call.1} parent=1 // pred_check_branch
      %94 = sbr.rel (0) target = $region49
    $region48: #{tpu_custom_call.1} parent=1 // pred_region
      %95 = dma.done [#allocation9], 2048
    $region49: #{tpu_custom_call.1} parent=1 // pred_fallthru
      _
    // Predicated region
    $region50: #{tpu_custom_call.1} parent=1 // pred_check
      _
    $region51: #{tpu_custom_call.1} parent=1 // pred_check_branch
      %97 = sbr.rel (0) target = $region53
    $region52: #{tpu_custom_call.1} parent=1 // pred_region
      %98 = dma.done [#allocation9], 1024
    $region53: #{tpu_custom_call.1} parent=1 // pred_fallthru
      _
    %v100 = vld [vmem:[#allocation2] sm:$0xff]
    %v101 = vld [vmem:[#allocation2 + $0x8] sm:$0xff]
    %v102 = vld [vmem:[#allocation2 + $0x10] sm:$0xff]
    %v103 = vld [vmem:[#allocation2 + $0x18] sm:$0xff]
    %v104 = vld [vmem:[#allocation2 + $0x20] sm:$0xff]
    %v105 = vld [vmem:[#allocation2 + $0x28] sm:$0xff]
    %v106 = vld [vmem:[#allocation2 + $0x30] sm:$0xff]
    %v107 = vld [vmem:[#allocation2 + $0x38] sm:$0xff]
    %v108 = vld [vmem:[#allocation2 + $0x40] sm:$0xff]
    %v109 = vld [vmem:[#allocation2 + $0x48] sm:$0xff]
    %v110 = vld [vmem:[#allocation2 + $0x50] sm:$0xff]
    %v111 = vld [vmem:[#allocation2 + $0x58] sm:$0xff]
    %v112 = vld [vmem:[#allocation2 + $0x60] sm:$0xff]
    %v113 = vld [vmem:[#allocation2 + $0x68] sm:$0xff]
    %v114 = vld [vmem:[#allocation2 + $0x70] sm:$0xff]
    %v115 = vld [vmem:[#allocation2 + $0x78] sm:$0xff]
    %v116 = vld [vmem:[#allocation2 + $0x80] sm:$0xff]
    %v117 = vld [vmem:[#allocation2 + $0x88] sm:$0xff]
    %v118 = vld [vmem:[#allocation2 + $0x90] sm:$0xff]
    %v119 = vld [vmem:[#allocation2 + $0x98] sm:$0xff]
    %v120 = vld [vmem:[#allocation2 + $0xa0] sm:$0xff]
    %v121 = vld [vmem:[#allocation2 + $0xa8] sm:$0xff]
    %v122 = vld [vmem:[#allocation2 + $0xb0] sm:$0xff]
    %v123 = vld [vmem:[#allocation2 + $0xb8] sm:$0xff]
    %v124 = vld [vmem:[#allocation2 + $0xc0] sm:$0xff]
    %v125 = vld [vmem:[#allocation2 + $0xc8] sm:$0xff]
    %v126 = vld [vmem:[#allocation2 + $0xd0] sm:$0xff]
    %v127 = vld [vmem:[#allocation2 + $0xd8] sm:$0xff]
    %v128 = vld [vmem:[#allocation2 + $0xe0] sm:$0xff]
    %v129 = vld [vmem:[#allocation2 + $0xe8] sm:$0xff]
    %v130 = vld [vmem:[#allocation2 + $0xf0] sm:$0xff]
    %v131 = vld [vmem:[#allocation2 + $0xf8] sm:$0xff]
    %v132 = vld [vmem:[#allocation2 + $0x100] sm:$0xff]
    %v133 = vld [vmem:[#allocation2 + $0x108] sm:$0xff]
    %v134 = vld [vmem:[#allocation2 + $0x110] sm:$0xff]
    %v135 = vld [vmem:[#allocation2 + $0x118] sm:$0xff]
    %v136 = vld [vmem:[#allocation2 + $0x120] sm:$0xff]
    %v137 = vld [vmem:[#allocation2 + $0x128] sm:$0xff]
    %v138 = vld [vmem:[#allocation2 + $0x130] sm:$0xff]
    %v139 = vld [vmem:[#allocation2 + $0x138] sm:$0xff]
    %v140 = vld [vmem:[#allocation2 + $0x140] sm:$0xff]
    %v141 = vld [vmem:[#allocation2 + $0x148] sm:$0xff]
    %v142 = vld [vmem:[#allocation2 + $0x150] sm:$0xff]
    %v143 = vld [vmem:[#allocation2 + $0x158] sm:$0xff]
    %v144 = vld [vmem:[#allocation2 + $0x160] sm:$0xff]
    %v145 = vld [vmem:[#allocation2 + $0x168] sm:$0xff]
    %v146 = vld [vmem:[#allocation2 + $0x170] sm:$0xff]
    %v147 = vld [vmem:[#allocation2 + $0x178] sm:$0xff]
    %v148 = vld [vmem:[#allocation2 + $0x180] sm:$0xff]
    %v149 = vld [vmem:[#allocation2 + $0x188] sm:$0xff]
    %v150 = vld [vmem:[#allocation2 + $0x190] sm:$0xff]
    %v151 = vld [vmem:[#allocation2 + $0x198] sm:$0xff]
    %v152 = vld [vmem:[#allocation2 + $0x1a0] sm:$0xff]
    %v153 = vld [vmem:[#allocation2 + $0x1a8] sm:$0xff]
    %v154 = vld [vmem:[#allocation2 + $0x1b0] sm:$0xff]
    %v155 = vld [vmem:[#allocation2 + $0x1b8] sm:$0xff]
    %v156 = vld [vmem:[#allocation2 + $0x1c0] sm:$0xff]
    %v157 = vld [vmem:[#allocation2 + $0x1c8] sm:$0xff]
    %v158 = vld [vmem:[#allocation2 + $0x1d0] sm:$0xff]
    %v159 = vld [vmem:[#allocation2 + $0x1d8] sm:$0xff]
    %v160 = vld [vmem:[#allocation2 + $0x1e0] sm:$0xff]
    %v161 = vld [vmem:[#allocation2 + $0x1e8] sm:$0xff]
    %v162 = vld [vmem:[#allocation2 + $0x1f0] sm:$0xff]
    %v163 = vld [vmem:[#allocation2 + $0x1f8] sm:$0xff]
    %v164 = vld [vmem:[#allocation2 + $0x200] sm:$0xff]
    %v165 = vld [vmem:[#allocation2 + $0x208] sm:$0xff]
    %v166 = vld [vmem:[#allocation2 + $0x210] sm:$0xff]
    %v167 = vld [vmem:[#allocation2 + $0x218] sm:$0xff]
    %v168 = vld [vmem:[#allocation2 + $0x220] sm:$0xff]
    %v169 = vld [vmem:[#allocation2 + $0x228] sm:$0xff]
    %v170 = vld [vmem:[#allocation2 + $0x230] sm:$0xff]
    %v171 = vld [vmem:[#allocation2 + $0x238] sm:$0xff]
    %v172 = vld [vmem:[#allocation2 + $0x240] sm:$0xff]
    %v173 = vld [vmem:[#allocation2 + $0x248] sm:$0xff]
    %v174 = vld [vmem:[#allocation2 + $0x250] sm:$0xff]
    %v175 = vld [vmem:[#allocation2 + $0x258] sm:$0xff]
    %v176 = vld [vmem:[#allocation2 + $0x260] sm:$0xff]
    %v177 = vld [vmem:[#allocation2 + $0x268] sm:$0xff]
    %v178 = vld [vmem:[#allocation2 + $0x270] sm:$0xff]
    %v179 = vld [vmem:[#allocation2 + $0x278] sm:$0xff]
    %v180 = vunpack.c.l.bf16 %v100
    %v181 = vunpack.c.h.bf16 %v100
    %v182 = vunpack.c.l.bf16 %v101
    %v183 = vunpack.c.h.bf16 %v101
    %v184 = vunpack.c.l.bf16 %v102
    %v185 = vunpack.c.h.bf16 %v102
    %v186 = vunpack.c.l.bf16 %v103
    %v187 = vunpack.c.h.bf16 %v103
    %v188 = vunpack.c.l.bf16 %v104
    %v189 = vunpack.c.h.bf16 %v104
    %v190 = vunpack.c.l.bf16 %v105
    %v191 = vunpack.c.h.bf16 %v105
    %v192 = vunpack.c.l.bf16 %v106
    %v193 = vunpack.c.h.bf16 %v106
    %v194 = vunpack.c.l.bf16 %v107
    %v195 = vunpack.c.h.bf16 %v107
    %v196 = vunpack.c.l.bf16 %v108
    %v197 = vunpack.c.h.bf16 %v108
    %v198 = vunpack.c.l.bf16 %v109
    %v199 = vunpack.c.h.bf16 %v109
    %v200 = vunpack.c.l.bf16 %v110
    %v201 = vunpack.c.h.bf16 %v110
    %v202 = vunpack.c.l.bf16 %v111
    %v203 = vunpack.c.h.bf16 %v111
    %v204 = vunpack.c.l.bf16 %v112
    %v205 = vunpack.c.h.bf16 %v112
    %v206 = vunpack.c.l.bf16 %v113
    %v207 = vunpack.c.h.bf16 %v113
    %v208 = vunpack.c.l.bf16 %v114
    %v209 = vunpack.c.h.bf16 %v114
    %v210 = vunpack.c.l.bf16 %v115
    %v211 = vunpack.c.h.bf16 %v115
    %v212 = vunpack.c.l.bf16 %v116
    %v213 = vunpack.c.h.bf16 %v116
    %v214 = vunpack.c.l.bf16 %v117
    %v215 = vunpack.c.h.bf16 %v117
    %v216 = vunpack.c.l.bf16 %v118
    %v217 = vunpack.c.h.bf16 %v118
    %v218 = vunpack.c.l.bf16 %v119
    %v219 = vunpack.c.h.bf16 %v119
    %v220 = vunpack.c.l.bf16 %v120
    %v221 = vunpack.c.h.bf16 %v120
    %v222 = vunpack.c.l.bf16 %v121
    %v223 = vunpack.c.h.bf16 %v121
    %v224 = vunpack.c.l.bf16 %v122
    %v225 = vunpack.c.h.bf16 %v122
    %v226 = vunpack.c.l.bf16 %v123
    %v227 = vunpack.c.h.bf16 %v123
    %v228 = vunpack.c.l.bf16 %v124
    %v229 = vunpack.c.h.bf16 %v124
    %v230 = vunpack.c.l.bf16 %v125
    %v231 = vunpack.c.h.bf16 %v125
    %v232 = vunpack.c.l.bf16 %v126
    %v233 = vunpack.c.h.bf16 %v126
    %v234 = vunpack.c.l.bf16 %v127
    %v235 = vunpack.c.h.bf16 %v127
    %v236 = vunpack.c.l.bf16 %v128
    %v237 = vunpack.c.h.bf16 %v128
    %v238 = vunpack.c.l.bf16 %v129
    %v239 = vunpack.c.h.bf16 %v129
    %v240 = vunpack.c.l.bf16 %v130
    %v241 = vunpack.c.h.bf16 %v130
    %v242 = vunpack.c.l.bf16 %v131
    %v243 = vunpack.c.h.bf16 %v131
    %v244 = vunpack.c.l.bf16 %v132
    %v245 = vunpack.c.h.bf16 %v132
    %v246 = vunpack.c.l.bf16 %v133
    %v247 = vunpack.c.h.bf16 %v133
    %v248 = vunpack.c.l.bf16 %v134
    %v249 = vunpack.c.h.bf16 %v134
    %v250 = vunpack.c.l.bf16 %v135
    %v251 = vunpack.c.h.bf16 %v135
    %v252 = vunpack.c.l.bf16 %v136
    %v253 = vunpack.c.h.bf16 %v136
    %v254 = vunpack.c.l.bf16 %v137
    %v255 = vunpack.c.h.bf16 %v137
    %v256 = vunpack.c.l.bf16 %v138
    %v257 = vunpack.c.h.bf16 %v138
    %v258 = vunpack.c.l.bf16 %v139
    %v259 = vunpack.c.h.bf16 %v139
    %v260 = vunpack.c.l.bf16 %v140
    %v261 = vunpack.c.h.bf16 %v140
    %v262 = vunpack.c.l.bf16 %v141
    %v263 = vunpack.c.h.bf16 %v141
    %v264 = vunpack.c.l.bf16 %v142
    %v265 = vunpack.c.h.bf16 %v142
    %v266 = vunpack.c.l.bf16 %v143
    %v267 = vunpack.c.h.bf16 %v143
    %v268 = vunpack.c.l.bf16 %v144
    %v269 = vunpack.c.h.bf16 %v144
    %v270 = vunpack.c.l.bf16 %v145
    %v271 = vunpack.c.h.bf16 %v145
    %v272 = vunpack.c.l.bf16 %v146
    %v273 = vunpack.c.h.bf16 %v146
    %v274 = vunpack.c.l.bf16 %v147
    %v275 = vunpack.c.h.bf16 %v147
    %v276 = vunpack.c.l.bf16 %v148
    %v277 = vunpack.c.h.bf16 %v148
    %v278 = vunpack.c.l.bf16 %v149
    %v279 = vunpack.c.h.bf16 %v149
    %v280 = vunpack.c.l.bf16 %v150
    %v281 = vunpack.c.h.bf16 %v150
    %v282 = vunpack.c.l.bf16 %v151
    %v283 = vunpack.c.h.bf16 %v151
    %v284 = vunpack.c.l.bf16 %v152
    %v285 = vunpack.c.h.bf16 %v152
    %v286 = vunpack.c.l.bf16 %v153
    %v287 = vunpack.c.h.bf16 %v153
    %v288 = vunpack.c.l.bf16 %v154
    %v289 = vunpack.c.h.bf16 %v154
    %v290 = vunpack.c.l.bf16 %v155
    %v291 = vunpack.c.h.bf16 %v155
    %v292 = vunpack.c.l.bf16 %v156
    %v293 = vunpack.c.h.bf16 %v156
    %v294 = vunpack.c.l.bf16 %v157
    %v295 = vunpack.c.h.bf16 %v157
    %v296 = vunpack.c.l.bf16 %v158
    %v297 = vunpack.c.h.bf16 %v158
    %v298 = vunpack.c.l.bf16 %v159
    %v299 = vunpack.c.h.bf16 %v159
    %v300 = vunpack.c.l.bf16 %v160
    %v301 = vunpack.c.h.bf16 %v160
    %v302 = vunpack.c.l.bf16 %v161
    %v303 = vunpack.c.h.bf16 %v161
    %v304 = vunpack.c.l.bf16 %v162
    %v305 = vunpack.c.h.bf16 %v162
    %v306 = vunpack.c.l.bf16 %v163
    %v307 = vunpack.c.h.bf16 %v163
    %v308 = vunpack.c.l.bf16 %v164
    %v309 = vunpack.c.h.bf16 %v164
    %v310 = vunpack.c.l.bf16 %v165
    %v311 = vunpack.c.h.bf16 %v165
    %v312 = vunpack.c.l.bf16 %v166
    %v313 = vunpack.c.h.bf16 %v166
    %v314 = vunpack.c.l.bf16 %v167
    %v315 = vunpack.c.h.bf16 %v167
    %v316 = vunpack.c.l.bf16 %v168
    %v317 = vunpack.c.h.bf16 %v168
    %v318 = vunpack.c.l.bf16 %v169
    %v319 = vunpack.c.h.bf16 %v169
    %v320 = vunpack.c.l.bf16 %v170
    %v321 = vunpack.c.h.bf16 %v170
    %v322 = vunpack.c.l.bf16 %v171
    %v323 = vunpack.c.h.bf16 %v171
    %v324 = vunpack.c.l.bf16 %v172
    %v325 = vunpack.c.h.bf16 %v172
    %v326 = vunpack.c.l.bf16 %v173
    %v327 = vunpack.c.h.bf16 %v173
    %v328 = vunpack.c.l.bf16 %v174
    %v329 = vunpack.c.h.bf16 %v174
    %v330 = vunpack.c.l.bf16 %v175
    %v331 = vunpack.c.h.bf16 %v175
    %v332 = vunpack.c.l.bf16 %v176
    %v333 = vunpack.c.h.bf16 %v176
    %v334 = vunpack.c.l.bf16 %v177
    %v335 = vunpack.c.h.bf16 %v177
    %v336 = vunpack.c.l.bf16 %v178
    %v337 = vunpack.c.h.bf16 %v178
    %v338 = vunpack.c.l.bf16 %v179
    %v339 = vunpack.c.h.bf16 %v179
    %v340 = vadd.f32 %v180, %v190
    %v341 = vrot.slane %v340, 4
    %v342 = vadd.f32 %v340, %v341
    %v343 = vrot.slane %v342, 2
    %v344 = vadd.f32 %v342, %v343
    %v345 = vrot.slane %v344, 1
    %v346 = vadd.f32 %v344, %v345
    %v347 = vadd.f32 %v181, %v191
    %v348 = vrot.slane %v347, 4
    %v349 = vadd.f32 %v347, %v348
    %v350 = vrot.slane %v349, 2
    %v351 = vadd.f32 %v349, %v350
    %v352 = vrot.slane %v351, 1
    %v353 = vadd.f32 %v351, %v352
    %v354 = vadd.f32 %v182, %v192
    %v355 = vrot.slane %v354, 4
    %v356 = vadd.f32 %v354, %v355
    %v357 = vrot.slane %v356, 2
    %v358 = vadd.f32 %v356, %v357
    %v359 = vrot.slane %v358, 1
    %v360 = vadd.f32 %v358, %v359
    %v361 = vadd.f32 %v183, %v193
    %v362 = vrot.slane %v361, 4
    %v363 = vadd.f32 %v361, %v362
    %v364 = vrot.slane %v363, 2
    %v365 = vadd.f32 %v363, %v364
    %v366 = vrot.slane %v365, 1
    %v367 = vadd.f32 %v365, %v366
    %v368 = vadd.f32 %v184, %v194
    %v369 = vrot.slane %v368, 4
    %v370 = vadd.f32 %v368, %v369
    %v371 = vrot.slane %v370, 2
    %v372 = vadd.f32 %v370, %v371
    %v373 = vrot.slane %v372, 1
    %v374 = vadd.f32 %v372, %v373
    %v375 = vadd.f32 %v185, %v195
    %v376 = vrot.slane %v375, 4
    %v377 = vadd.f32 %v375, %v376
    %v378 = vrot.slane %v377, 2
    %v379 = vadd.f32 %v377, %v378
    %v380 = vrot.slane %v379, 1
    %v381 = vadd.f32 %v379, %v380
    %v382 = vadd.f32 %v186, %v196
    %v383 = vrot.slane %v382, 4
    %v384 = vadd.f32 %v382, %v383
    %v385 = vrot.slane %v384, 2
    %v386 = vadd.f32 %v384, %v385
    %v387 = vrot.slane %v386, 1
    %v388 = vadd.f32 %v386, %v387
    %v389 = vadd.f32 %v187, %v197
    %v390 = vrot.slane %v389, 4
    %v391 = vadd.f32 %v389, %v390
    %v392 = vrot.slane %v391, 2
    %v393 = vadd.f32 %v391, %v392
    %v394 = vrot.slane %v393, 1
    %v395 = vadd.f32 %v393, %v394
    %v396 = vadd.f32 %v188, %v198
    %v397 = vrot.slane %v396, 4
    %v398 = vadd.f32 %v396, %v397
    %v399 = vrot.slane %v398, 2
    %v400 = vadd.f32 %v398, %v399
    %v401 = vrot.slane %v400, 1
    %v402 = vadd.f32 %v400, %v401
    %v403 = vadd.f32 %v189, %v199
    %v404 = vrot.slane %v403, 4
    %v405 = vadd.f32 %v403, %v404
    %v406 = vrot.slane %v405, 2
    %v407 = vadd.f32 %v405, %v406
    %v408 = vrot.slane %v407, 1
    %v409 = vadd.f32 %v407, %v408
    %v410 = vadd.f32 %v200, %v210
    %v411 = vrot.slane %v410, 4
    %v412 = vadd.f32 %v410, %v411
    %v413 = vrot.slane %v412, 2
    %v414 = vadd.f32 %v412, %v413
    %v415 = vrot.slane %v414, 1
    %v416 = vadd.f32 %v414, %v415
    %v417 = vadd.f32 %v201, %v211
    %v418 = vrot.slane %v417, 4
    %v419 = vadd.f32 %v417, %v418
    %v420 = vrot.slane %v419, 2
    %v421 = vadd.f32 %v419, %v420
    %v422 = vrot.slane %v421, 1
    %v423 = vadd.f32 %v421, %v422
    %v424 = vadd.f32 %v202, %v212
    %v425 = vrot.slane %v424, 4
    %v426 = vadd.f32 %v424, %v425
    %v427 = vrot.slane %v426, 2
    %v428 = vadd.f32 %v426, %v427
    %v429 = vrot.slane %v428, 1
    %v430 = vadd.f32 %v428, %v429
    %v431 = vadd.f32 %v203, %v213
    %v432 = vrot.slane %v431, 4
    %v433 = vadd.f32 %v431, %v432
    %v434 = vrot.slane %v433, 2
    %v435 = vadd.f32 %v433, %v434
    %v436 = vrot.slane %v435, 1
    %v437 = vadd.f32 %v435, %v436
    %v438 = vadd.f32 %v204, %v214
    %v439 = vrot.slane %v438, 4
    %v440 = vadd.f32 %v438, %v439
    %v441 = vrot.slane %v440, 2
    %v442 = vadd.f32 %v440, %v441
    %v443 = vrot.slane %v442, 1
    %v444 = vadd.f32 %v442, %v443
    %v445 = vadd.f32 %v205, %v215
    %v446 = vrot.slane %v445, 4
    %v447 = vadd.f32 %v445, %v446
    %v448 = vrot.slane %v447, 2
    %v449 = vadd.f32 %v447, %v448
    %v450 = vrot.slane %v449, 1
    %v451 = vadd.f32 %v449, %v450
    %v452 = vadd.f32 %v206, %v216
    %v453 = vrot.slane %v452, 4
    %v454 = vadd.f32 %v452, %v453
    %v455 = vrot.slane %v454, 2
    %v456 = vadd.f32 %v454, %v455
    %v457 = vrot.slane %v456, 1
    %v458 = vadd.f32 %v456, %v457
    %v459 = vadd.f32 %v207, %v217
    %v460 = vrot.slane %v459, 4
    %v461 = vadd.f32 %v459, %v460
    %v462 = vrot.slane %v461, 2
    %v463 = vadd.f32 %v461, %v462
    %v464 = vrot.slane %v463, 1
    %v465 = vadd.f32 %v463, %v464
    %v466 = vadd.f32 %v208, %v218
    %v467 = vrot.slane %v466, 4
    %v468 = vadd.f32 %v466, %v467
    %v469 = vrot.slane %v468, 2
    %v470 = vadd.f32 %v468, %v469
    %v471 = vrot.slane %v470, 1
    %v472 = vadd.f32 %v470, %v471
    %v473 = vadd.f32 %v209, %v219
    %v474 = vrot.slane %v473, 4
    %v475 = vadd.f32 %v473, %v474
    %v476 = vrot.slane %v475, 2
    %v477 = vadd.f32 %v475, %v476
    %v478 = vrot.slane %v477, 1
    %v479 = vadd.f32 %v477, %v478
    %v480 = vadd.f32 %v220, %v230
    %v481 = vrot.slane %v480, 4
    %v482 = vadd.f32 %v480, %v481
    %v483 = vrot.slane %v482, 2
    %v484 = vadd.f32 %v482, %v483
    %v485 = vrot.slane %v484, 1
    %v486 = vadd.f32 %v484, %v485
    %v487 = vadd.f32 %v221, %v231
    %v488 = vrot.slane %v487, 4
    %v489 = vadd.f32 %v487, %v488
    %v490 = vrot.slane %v489, 2
    %v491 = vadd.f32 %v489, %v490
    %v492 = vrot.slane %v491, 1
    %v493 = vadd.f32 %v491, %v492
    %v494 = vadd.f32 %v222, %v232
    %v495 = vrot.slane %v494, 4
    %v496 = vadd.f32 %v494, %v495
    %v497 = vrot.slane %v496, 2
    %v498 = vadd.f32 %v496, %v497
    %v499 = vrot.slane %v498, 1
    %v500 = vadd.f32 %v498, %v499
    %v501 = vadd.f32 %v223, %v233
    %v502 = vrot.slane %v501, 4
    %v503 = vadd.f32 %v501, %v502
    %v504 = vrot.slane %v503, 2
    %v505 = vadd.f32 %v503, %v504
    %v506 = vrot.slane %v505, 1
    %v507 = vadd.f32 %v505, %v506
    %v508 = vadd.f32 %v224, %v234
    %v509 = vrot.slane %v508, 4
    %v510 = vadd.f32 %v508, %v509
    %v511 = vrot.slane %v510, 2
    %v512 = vadd.f32 %v510, %v511
    %v513 = vrot.slane %v512, 1
    %v514 = vadd.f32 %v512, %v513
    %v515 = vadd.f32 %v225, %v235
    %v516 = vrot.slane %v515, 4
    %v517 = vadd.f32 %v515, %v516
    %v518 = vrot.slane %v517, 2
    %v519 = vadd.f32 %v517, %v518
    %v520 = vrot.slane %v519, 1
    %v521 = vadd.f32 %v519, %v520
    %v522 = vadd.f32 %v226, %v236
    %v523 = vrot.slane %v522, 4
    %v524 = vadd.f32 %v522, %v523
    %v525 = vrot.slane %v524, 2
    %v526 = vadd.f32 %v524, %v525
    %v527 = vrot.slane %v526, 1
    %v528 = vadd.f32 %v526, %v527
    %v529 = vadd.f32 %v227, %v237
    %v530 = vrot.slane %v529, 4
    %v531 = vadd.f32 %v529, %v530
    %v532 = vrot.slane %v531, 2
    %v533 = vadd.f32 %v531, %v532
    %v534 = vrot.slane %v533, 1
    %v535 = vadd.f32 %v533, %v534
    %v536 = vadd.f32 %v228, %v238
    %v537 = vrot.slane %v536, 4
    %v538 = vadd.f32 %v536, %v537
    %v539 = vrot.slane %v538, 2
    %v540 = vadd.f32 %v538, %v539
    %v541 = vrot.slane %v540, 1
    %v542 = vadd.f32 %v540, %v541
    %v543 = vadd.f32 %v229, %v239
    %v544 = vrot.slane %v543, 4
    %v545 = vadd.f32 %v543, %v544
    %v546 = vrot.slane %v545, 2
    %v547 = vadd.f32 %v545, %v546
    %v548 = vrot.slane %v547, 1
    %v549 = vadd.f32 %v547, %v548
    %v550 = vadd.f32 %v240, %v250
    %v551 = vrot.slane %v550, 4
    %v552 = vadd.f32 %v550, %v551
    %v553 = vrot.slane %v552, 2
    %v554 = vadd.f32 %v552, %v553
    %v555 = vrot.slane %v554, 1
    %v556 = vadd.f32 %v554, %v555
    %v557 = vadd.f32 %v241, %v251
    %v558 = vrot.slane %v557, 4
    %v559 = vadd.f32 %v557, %v558
    %v560 = vrot.slane %v559, 2
    %v561 = vadd.f32 %v559, %v560
    %v562 = vrot.slane %v561, 1
    %v563 = vadd.f32 %v561, %v562
    %v564 = vadd.f32 %v242, %v252
    %v565 = vrot.slane %v564, 4
    %v566 = vadd.f32 %v564, %v565
    %v567 = vrot.slane %v566, 2
    %v568 = vadd.f32 %v566, %v567
    %v569 = vrot.slane %v568, 1
    %v570 = vadd.f32 %v568, %v569
    %v571 = vadd.f32 %v243, %v253
    %v572 = vrot.slane %v571, 4
    %v573 = vadd.f32 %v571, %v572
    %v574 = vrot.slane %v573, 2
    %v575 = vadd.f32 %v573, %v574
    %v576 = vrot.slane %v575, 1
    %v577 = vadd.f32 %v575, %v576
    %v578 = vadd.f32 %v244, %v254
    %v579 = vrot.slane %v578, 4
    %v580 = vadd.f32 %v578, %v579
    %v581 = vrot.slane %v580, 2
    %v582 = vadd.f32 %v580, %v581
    %v583 = vrot.slane %v582, 1
    %v584 = vadd.f32 %v582, %v583
    %v585 = vadd.f32 %v245, %v255
    %v586 = vrot.slane %v585, 4
    %v587 = vadd.f32 %v585, %v586
    %v588 = vrot.slane %v587, 2
    %v589 = vadd.f32 %v587, %v588
    %v590 = vrot.slane %v589, 1
    %v591 = vadd.f32 %v589, %v590
    %v592 = vadd.f32 %v246, %v256
    %v593 = vrot.slane %v592, 4
    %v594 = vadd.f32 %v592, %v593
    %v595 = vrot.slane %v594, 2
    %v596 = vadd.f32 %v594, %v595
    %v597 = vrot.slane %v596, 1
    %v598 = vadd.f32 %v596, %v597
    %v599 = vadd.f32 %v247, %v257
    %v600 = vrot.slane %v599, 4
    %v601 = vadd.f32 %v599, %v600
    %v602 = vrot.slane %v601, 2
    %v603 = vadd.f32 %v601, %v602
    %v604 = vrot.slane %v603, 1
    %v605 = vadd.f32 %v603, %v604
    %v606 = vadd.f32 %v248, %v258
    %v607 = vrot.slane %v606, 4
    %v608 = vadd.f32 %v606, %v607
    %v609 = vrot.slane %v608, 2
    %v610 = vadd.f32 %v608, %v609
    %v611 = vrot.slane %v610, 1
    %v612 = vadd.f32 %v610, %v611
    %v613 = vadd.f32 %v249, %v259
    %v614 = vrot.slane %v613, 4
    %v615 = vadd.f32 %v613, %v614
    %v616 = vrot.slane %v615, 2
    %v617 = vadd.f32 %v615, %v616
    %v618 = vrot.slane %v617, 1
    %v619 = vadd.f32 %v617, %v618
    %v620 = vadd.f32 %v260, %v270
    %v621 = vrot.slane %v620, 4
    %v622 = vadd.f32 %v620, %v621
    %v623 = vrot.slane %v622, 2
    %v624 = vadd.f32 %v622, %v623
    %v625 = vrot.slane %v624, 1
    %v626 = vadd.f32 %v624, %v625
    %v627 = vadd.f32 %v261, %v271
    %v628 = vrot.slane %v627, 4
    %v629 = vadd.f32 %v627, %v628
    %v630 = vrot.slane %v629, 2
    %v631 = vadd.f32 %v629, %v630
    %v632 = vrot.slane %v631, 1
    %v633 = vadd.f32 %v631, %v632
    %v634 = vadd.f32 %v262, %v272
    %v635 = vrot.slane %v634, 4
    %v636 = vadd.f32 %v634, %v635
    %v637 = vrot.slane %v636, 2
    %v638 = vadd.f32 %v636, %v637
    %v639 = vrot.slane %v638, 1
    %v640 = vadd.f32 %v638, %v639
    %v641 = vadd.f32 %v263, %v273
    %v642 = vrot.slane %v641, 4
    %v643 = vadd.f32 %v641, %v642
    %v644 = vrot.slane %v643, 2
    %v645 = vadd.f32 %v643, %v644
    %v646 = vrot.slane %v645, 1
    %v647 = vadd.f32 %v645, %v646
    %v648 = vadd.f32 %v264, %v274
    %v649 = vrot.slane %v648, 4
    %v650 = vadd.f32 %v648, %v649
    %v651 = vrot.slane %v650, 2
    %v652 = vadd.f32 %v650, %v651
    %v653 = vrot.slane %v652, 1
    %v654 = vadd.f32 %v652, %v653
    %v655 = vadd.f32 %v265, %v275
    %v656 = vrot.slane %v655, 4
    %v657 = vadd.f32 %v655, %v656
    %v658 = vrot.slane %v657, 2
    %v659 = vadd.f32 %v657, %v658
    %v660 = vrot.slane %v659, 1
    %v661 = vadd.f32 %v659, %v660
    %v662 = vadd.f32 %v266, %v276
    %v663 = vrot.slane %v662, 4
    %v664 = vadd.f32 %v662, %v663
    %v665 = vrot.slane %v664, 2
    %v666 = vadd.f32 %v664, %v665
    %v667 = vrot.slane %v666, 1
    %v668 = vadd.f32 %v666, %v667
    %v669 = vadd.f32 %v267, %v277
    %v670 = vrot.slane %v669, 4
    %v671 = vadd.f32 %v669, %v670
    %v672 = vrot.slane %v671, 2
    %v673 = vadd.f32 %v671, %v672
    %v674 = vrot.slane %v673, 1
    %v675 = vadd.f32 %v673, %v674
    %v676 = vadd.f32 %v268, %v278
    %v677 = vrot.slane %v676, 4
    %v678 = vadd.f32 %v676, %v677
    %v679 = vrot.slane %v678, 2
    %v680 = vadd.f32 %v678, %v679
    %v681 = vrot.slane %v680, 1
    %v682 = vadd.f32 %v680, %v681
    %v683 = vadd.f32 %v269, %v279
    %v684 = vrot.slane %v683, 4
    %v685 = vadd.f32 %v683, %v684
    %v686 = vrot.slane %v685, 2
    %v687 = vadd.f32 %v685, %v686
    %v688 = vrot.slane %v687, 1
    %v689 = vadd.f32 %v687, %v688
    %v690 = vadd.f32 %v280, %v290
    %v691 = vrot.slane %v690, 4
    %v692 = vadd.f32 %v690, %v691
    %v693 = vrot.slane %v692, 2
    %v694 = vadd.f32 %v692, %v693
    %v695 = vrot.slane %v694, 1
    %v696 = vadd.f32 %v694, %v695
    %v697 = vadd.f32 %v281, %v291
    %v698 = vrot.slane %v697, 4
    %v699 = vadd.f32 %v697, %v698
    %v700 = vrot.slane %v699, 2
    %v701 = vadd.f32 %v699, %v700
    %v702 = vrot.slane %v701, 1
    %v703 = vadd.f32 %v701, %v702
    %v704 = vadd.f32 %v282, %v292
    %v705 = vrot.slane %v704, 4
    %v706 = vadd.f32 %v704, %v705
    %v707 = vrot.slane %v706, 2
    %v708 = vadd.f32 %v706, %v707
    %v709 = vrot.slane %v708, 1
    %v710 = vadd.f32 %v708, %v709
    %v711 = vadd.f32 %v283, %v293
    %v712 = vrot.slane %v711, 4
    %v713 = vadd.f32 %v711, %v712
    %v714 = vrot.slane %v713, 2
    %v715 = vadd.f32 %v713, %v714
    %v716 = vrot.slane %v715, 1
    %v717 = vadd.f32 %v715, %v716
    %v718 = vadd.f32 %v284, %v294
    %v719 = vrot.slane %v718, 4
    %v720 = vadd.f32 %v718, %v719
    %v721 = vrot.slane %v720, 2
    %v722 = vadd.f32 %v720, %v721
    %v723 = vrot.slane %v722, 1
    %v724 = vadd.f32 %v722, %v723
    %v725 = vadd.f32 %v285, %v295
    %v726 = vrot.slane %v725, 4
    %v727 = vadd.f32 %v725, %v726
    %v728 = vrot.slane %v727, 2
    %v729 = vadd.f32 %v727, %v728
    %v730 = vrot.slane %v729, 1
    %v731 = vadd.f32 %v729, %v730
    %v732 = vadd.f32 %v286, %v296
    %v733 = vrot.slane %v732, 4
    %v734 = vadd.f32 %v732, %v733
    %v735 = vrot.slane %v734, 2
    %v736 = vadd.f32 %v734, %v735
    %v737 = vrot.slane %v736, 1
    %v738 = vadd.f32 %v736, %v737
    %v739 = vadd.f32 %v287, %v297
    %v740 = vrot.slane %v739, 4
    %v741 = vadd.f32 %v739, %v740
    %v742 = vrot.slane %v741, 2
    %v743 = vadd.f32 %v741, %v742
    %v744 = vrot.slane %v743, 1
    %v745 = vadd.f32 %v743, %v744
    %v746 = vadd.f32 %v288, %v298
    %v747 = vrot.slane %v746, 4
    %v748 = vadd.f32 %v746, %v747
    %v749 = vrot.slane %v748, 2
    %v750 = vadd.f32 %v748, %v749
    %v751 = vrot.slane %v750, 1
    %v752 = vadd.f32 %v750, %v751
    %v753 = vadd.f32 %v289, %v299
    %v754 = vrot.slane %v753, 4
    %v755 = vadd.f32 %v753, %v754
    %v756 = vrot.slane %v755, 2
    %v757 = vadd.f32 %v755, %v756
    %v758 = vrot.slane %v757, 1
    %v759 = vadd.f32 %v757, %v758
    %v760 = vadd.f32 %v300, %v310
    %v761 = vrot.slane %v760, 4
    %v762 = vadd.f32 %v760, %v761
    %v763 = vrot.slane %v762, 2
    %v764 = vadd.f32 %v762, %v763
    %v765 = vrot.slane %v764, 1
    %v766 = vadd.f32 %v764, %v765
    %v767 = vadd.f32 %v301, %v311
    %v768 = vrot.slane %v767, 4
    %v769 = vadd.f32 %v767, %v768
    %v770 = vrot.slane %v769, 2
    %v771 = vadd.f32 %v769, %v770
    %v772 = vrot.slane %v771, 1
    %v773 = vadd.f32 %v771, %v772
    %v774 = vadd.f32 %v302, %v312
    %v775 = vrot.slane %v774, 4
    %v776 = vadd.f32 %v774, %v775
    %v777 = vrot.slane %v776, 2
    %v778 = vadd.f32 %v776, %v777
    %v779 = vrot.slane %v778, 1
    %v780 = vadd.f32 %v778, %v779
    %v781 = vadd.f32 %v303, %v313
    %v782 = vrot.slane %v781, 4
    %v783 = vadd.f32 %v781, %v782
    %v784 = vrot.slane %v783, 2
    %v785 = vadd.f32 %v783, %v784
    %v786 = vrot.slane %v785, 1
    %v787 = vadd.f32 %v785, %v786
    %v788 = vadd.f32 %v304, %v314
    %v789 = vrot.slane %v788, 4
    %v790 = vadd.f32 %v788, %v789
    %v791 = vrot.slane %v790, 2
    %v792 = vadd.f32 %v790, %v791
    %v793 = vrot.slane %v792, 1
    %v794 = vadd.f32 %v792, %v793
    %v795 = vadd.f32 %v305, %v315
    %v796 = vrot.slane %v795, 4
    %v797 = vadd.f32 %v795, %v796
    %v798 = vrot.slane %v797, 2
    %v799 = vadd.f32 %v797, %v798
    %v800 = vrot.slane %v799, 1
    %v801 = vadd.f32 %v799, %v800
    %v802 = vadd.f32 %v306, %v316
    %v803 = vrot.slane %v802, 4
    %v804 = vadd.f32 %v802, %v803
    %v805 = vrot.slane %v804, 2
    %v806 = vadd.f32 %v804, %v805
    %v807 = vrot.slane %v806, 1
    %v808 = vadd.f32 %v806, %v807
    %v809 = vadd.f32 %v307, %v317
    %v810 = vrot.slane %v809, 4
    %v811 = vadd.f32 %v809, %v810
    %v812 = vrot.slane %v811, 2
    %v813 = vadd.f32 %v811, %v812
    %v814 = vrot.slane %v813, 1
    %v815 = vadd.f32 %v813, %v814
    %v816 = vadd.f32 %v308, %v318
    %v817 = vrot.slane %v816, 4
    %v818 = vadd.f32 %v816, %v817
    %v819 = vrot.slane %v818, 2
    %v820 = vadd.f32 %v818, %v819
    %v821 = vrot.slane %v820, 1
    %v822 = vadd.f32 %v820, %v821
    %v823 = vadd.f32 %v309, %v319
    %v824 = vrot.slane %v823, 4
    %v825 = vadd.f32 %v823, %v824
    %v826 = vrot.slane %v825, 2
    %v827 = vadd.f32 %v825, %v826
    %v828 = vrot.slane %v827, 1
    %v829 = vadd.f32 %v827, %v828
    %v830 = vadd.f32 %v320, %v330
    %v831 = vrot.slane %v830, 4
    %v832 = vadd.f32 %v830, %v831
    %v833 = vrot.slane %v832, 2
    %v834 = vadd.f32 %v832, %v833
    %v835 = vrot.slane %v834, 1
    %v836 = vadd.f32 %v834, %v835
    %v837 = vadd.f32 %v321, %v331
    %v838 = vrot.slane %v837, 4
    %v839 = vadd.f32 %v837, %v838
    %v840 = vrot.slane %v839, 2
    %v841 = vadd.f32 %v839, %v840
    %v842 = vrot.slane %v841, 1
    %v843 = vadd.f32 %v841, %v842
    %v844 = vadd.f32 %v322, %v332
    %v845 = vrot.slane %v844, 4
    %v846 = vadd.f32 %v844, %v845
    %v847 = vrot.slane %v846, 2
    %v848 = vadd.f32 %v846, %v847
    %v849 = vrot.slane %v848, 1
    %v850 = vadd.f32 %v848, %v849
    %v851 = vadd.f32 %v323, %v333
    %v852 = vrot.slane %v851, 4
    %v853 = vadd.f32 %v851, %v852
    %v854 = vrot.slane %v853, 2
    %v855 = vadd.f32 %v853, %v854
    %v856 = vrot.slane %v855, 1
    %v857 = vadd.f32 %v855, %v856
    %v858 = vadd.f32 %v324, %v334
    %v859 = vrot.slane %v858, 4
    %v860 = vadd.f32 %v858, %v859
    %v861 = vrot.slane %v860, 2
    %v862 = vadd.f32 %v860, %v861
    %v863 = vrot.slane %v862, 1
    %v864 = vadd.f32 %v862, %v863
    %v865 = vadd.f32 %v325, %v335
    %v866 = vrot.slane %v865, 4
    %v867 = vadd.f32 %v865, %v866
    %v868 = vrot.slane %v867, 2
    %v869 = vadd.f32 %v867, %v868
    %v870 = vrot.slane %v869, 1
    %v871 = vadd.f32 %v869, %v870
    %v872 = vadd.f32 %v326, %v336
    %v873 = vrot.slane %v872, 4
    %v874 = vadd.f32 %v872, %v873
    %v875 = vrot.slane %v874, 2
    %v876 = vadd.f32 %v874, %v875
    %v877 = vrot.slane %v876, 1
    %v878 = vadd.f32 %v876, %v877
    %v879 = vadd.f32 %v327, %v337
    %v880 = vrot.slane %v879, 4
    %v881 = vadd.f32 %v879, %v880
    %v882 = vrot.slane %v881, 2
    %v883 = vadd.f32 %v881, %v882
    %v884 = vrot.slane %v883, 1
    %v885 = vadd.f32 %v883, %v884
    %v886 = vadd.f32 %v328, %v338
    %v887 = vrot.slane %v886, 4
    %v888 = vadd.f32 %v886, %v887
    %v889 = vrot.slane %v888, 2
    %v890 = vadd.f32 %v888, %v889
    %v891 = vrot.slane %v890, 1
    %v892 = vadd.f32 %v890, %v891
    %v893 = vadd.f32 %v329, %v339
    %v894 = vrot.slane %v893, 4
    %v895 = vadd.f32 %v893, %v894
    %v896 = vrot.slane %v895, 2
    %v897 = vadd.f32 %v895, %v896
    %v898 = vrot.slane %v897, 1
    %v899 = vadd.f32 %v897, %v898
    %v900 = vmul.f32 %v346, 0.0625
    %v901 = vmul.f32 %v353, 0.0625
    %v902 = vmul.f32 %v360, 0.0625
    %v903 = vmul.f32 %v367, 0.0625
    %v904 = vmul.f32 %v374, 0.0625
    %v905 = vmul.f32 %v381, 0.0625
    %v906 = vmul.f32 %v388, 0.0625
    %v907 = vmul.f32 %v395, 0.0625
    %v908 = vmul.f32 %v402, 0.0625
    %v909 = vmul.f32 %v409, 0.0625
    %v910 = vmul.f32 %v416, 0.0625
    %v911 = vmul.f32 %v423, 0.0625
    %v912 = vmul.f32 %v430, 0.0625
    %v913 = vmul.f32 %v437, 0.0625
    %v914 = vmul.f32 %v444, 0.0625
    %v915 = vmul.f32 %v451, 0.0625
    %v916 = vmul.f32 %v458, 0.0625
    %v917 = vmul.f32 %v465, 0.0625
    %v918 = vmul.f32 %v472, 0.0625
    %v919 = vmul.f32 %v479, 0.0625
    %v920 = vmul.f32 %v486, 0.0625
    %v921 = vmul.f32 %v493, 0.0625
    %v922 = vmul.f32 %v500, 0.0625
    %v923 = vmul.f32 %v507, 0.0625
    %v924 = vmul.f32 %v514, 0.0625
    %v925 = vmul.f32 %v521, 0.0625
    %v926 = vmul.f32 %v528, 0.0625
    %v927 = vmul.f32 %v535, 0.0625
    %v928 = vmul.f32 %v542, 0.0625
    %v929 = vmul.f32 %v549, 0.0625
    %v930 = vmul.f32 %v556, 0.0625
    %v931 = vmul.f32 %v563, 0.0625
    %v932 = vmul.f32 %v570, 0.0625
    %v933 = vmul.f32 %v577, 0.0625
    %v934 = vmul.f32 %v584, 0.0625
    %v935 = vmul.f32 %v591, 0.0625
    %v936 = vmul.f32 %v598, 0.0625
    %v937 = vmul.f32 %v605, 0.0625
    %v938 = vmul.f32 %v612, 0.0625
    %v939 = vmul.f32 %v619, 0.0625
    %v940 = vmul.f32 %v626, 0.0625
    %v941 = vmul.f32 %v633, 0.0625
    %v942 = vmul.f32 %v640, 0.0625
    %v943 = vmul.f32 %v647, 0.0625
    %v944 = vmul.f32 %v654, 0.0625
    %v945 = vmul.f32 %v661, 0.0625
    %v946 = vmul.f32 %v668, 0.0625
    %v947 = vmul.f32 %v675, 0.0625
    %v948 = vmul.f32 %v682, 0.0625
    %v949 = vmul.f32 %v689, 0.0625
    %v950 = vmul.f32 %v696, 0.0625
    %v951 = vmul.f32 %v703, 0.0625
    %v952 = vmul.f32 %v710, 0.0625
    %v953 = vmul.f32 %v717, 0.0625
    %v954 = vmul.f32 %v724, 0.0625
    %v955 = vmul.f32 %v731, 0.0625
    %v956 = vmul.f32 %v738, 0.0625
    %v957 = vmul.f32 %v745, 0.0625
    %v958 = vmul.f32 %v752, 0.0625
    %v959 = vmul.f32 %v759, 0.0625
    %v960 = vmul.f32 %v766, 0.0625
    %v961 = vmul.f32 %v773, 0.0625
    %v962 = vmul.f32 %v780, 0.0625
    %v963 = vmul.f32 %v787, 0.0625
    %v964 = vmul.f32 %v794, 0.0625
    %v965 = vmul.f32 %v801, 0.0625
    %v966 = vmul.f32 %v808, 0.0625
    %v967 = vmul.f32 %v815, 0.0625
    %v968 = vmul.f32 %v822, 0.0625
    %v969 = vmul.f32 %v829, 0.0625
    %v970 = vmul.f32 %v836, 0.0625
    %v971 = vmul.f32 %v843, 0.0625
    %v972 = vmul.f32 %v850, 0.0625
    %v973 = vmul.f32 %v857, 0.0625
    %v974 = vmul.f32 %v864, 0.0625
    %v975 = vmul.f32 %v871, 0.0625
    %v976 = vmul.f32 %v878, 0.0625
    %v977 = vmul.f32 %v885, 0.0625
    %v978 = vmul.f32 %v892, 0.0625
    %v979 = vmul.f32 %v899, 0.0625
    %v980 = vld [vmem:[#allocation5] sm:$0xff]
    %v981 = vld [vmem:[#allocation5 + $0x8] sm:$0xff]
    %v982 = vld [vmem:[#allocation5 + $0x10] sm:$0xff]
    %v983 = vld [vmem:[#allocation5 + $0x18] sm:$0xff]
    %v984 = vld [vmem:[#allocation5 + $0x20] sm:$0xff]
    %v985 = vld [vmem:[#allocation5 + $0x28] sm:$0xff]
    %v986 = vld [vmem:[#allocation5 + $0x30] sm:$0xff]
    %v987 = vld [vmem:[#allocation5 + $0x38] sm:$0xff]
    %v988 = vld [vmem:[#allocation5 + $0x40] sm:$0xff]
    %v989 = vld [vmem:[#allocation5 + $0x48] sm:$0xff]
    %vm1070 = vcmask 1041409
    %v1071 = vsel %vm1070, %v910, %v900
    %vm1072 = vcmask 1042434
    %v1073 = vsel %vm1072, %v920, %v1071
    %vm1074 = vcmask 1043459
    %v1075 = vsel %vm1074, %v930, %v1073
    %vm1076 = vcmask 1044484
    %v1077 = vsel %vm1076, %v940, %v1075
    %vm1078 = vcmask 1045509
    %v1079 = vsel %vm1078, %v950, %v1077
    %vm1080 = vcmask 1046534
    %v1081 = vsel %vm1080, %v960, %v1079
    %vm1082 = vcmask 1047559
    %v1083 = vsel %vm1082, %v970, %v1081
    %v1084 = vsel %vm1070, %v911, %v901
    %v1085 = vsel %vm1072, %v921, %v1084
    %v1086 = vsel %vm1074, %v931, %v1085
    %v1087 = vsel %vm1076, %v941, %v1086
    %v1088 = vsel %vm1078, %v951, %v1087
    %v1089 = vsel %vm1080, %v961, %v1088
    %v1090 = vsel %vm1082, %v971, %v1089
    %v1091 = vsel %vm1070, %v912, %v902
    %v1092 = vsel %vm1072, %v922, %v1091
    %v1093 = vsel %vm1074, %v932, %v1092
    %v1094 = vsel %vm1076, %v942, %v1093
    %v1095 = vsel %vm1078, %v952, %v1094
    %v1096 = vsel %vm1080, %v962, %v1095
    %v1097 = vsel %vm1082, %v972, %v1096
    %v1098 = vsel %vm1070, %v913, %v903
    %v1099 = vsel %vm1072, %v923, %v1098
    %v1100 = vsel %vm1074, %v933, %v1099
    %v1101 = vsel %vm1076, %v943, %v1100
    %v1102 = vsel %vm1078, %v953, %v1101
    %v1103 = vsel %vm1080, %v963, %v1102
    %v1104 = vsel %vm1082, %v973, %v1103
    %v1105 = vsel %vm1070, %v914, %v904
    %v1106 = vsel %vm1072, %v924, %v1105
    %v1107 = vsel %vm1074, %v934, %v1106
    %v1108 = vsel %vm1076, %v944, %v1107
    %v1109 = vsel %vm1078, %v954, %v1108
    %v1110 = vsel %vm1080, %v964, %v1109
    %v1111 = vsel %vm1082, %v974, %v1110
    %v1112 = vsel %vm1070, %v915, %v905
    %v1113 = vsel %vm1072, %v925, %v1112
    %v1114 = vsel %vm1074, %v935, %v1113
    %v1115 = vsel %vm1076, %v945, %v1114
    %v1116 = vsel %vm1078, %v955, %v1115
    %v1117 = vsel %vm1080, %v965, %v1116
    %v1118 = vsel %vm1082, %v975, %v1117
    %v1119 = vsel %vm1070, %v916, %v906
    %v1120 = vsel %vm1072, %v926, %v1119
    %v1121 = vsel %vm1074, %v936, %v1120
    %v1122 = vsel %vm1076, %v946, %v1121
    %v1123 = vsel %vm1078, %v956, %v1122
    %v1124 = vsel %vm1080, %v966, %v1123
    %v1125 = vsel %vm1082, %v976, %v1124
    %v1126 = vsel %vm1070, %v917, %v907
    %v1127 = vsel %vm1072, %v927, %v1126
    %v1128 = vsel %vm1074, %v937, %v1127
    %v1129 = vsel %vm1076, %v947, %v1128
    %v1130 = vsel %vm1078, %v957, %v1129
    %v1131 = vsel %vm1080, %v967, %v1130
    %v1132 = vsel %vm1082, %v977, %v1131
    %v1133 = vsel %vm1070, %v918, %v908
    %v1134 = vsel %vm1072, %v928, %v1133
    %v1135 = vsel %vm1074, %v938, %v1134
    %v1136 = vsel %vm1076, %v948, %v1135
    %v1137 = vsel %vm1078, %v958, %v1136
    %v1138 = vsel %vm1080, %v968, %v1137
    %v1139 = vsel %vm1082, %v978, %v1138
    %v1140 = vsel %vm1070, %v919, %v909
    %v1141 = vsel %vm1072, %v929, %v1140
    %v1142 = vsel %vm1074, %v939, %v1141
    %v1143 = vsel %vm1076, %v949, %v1142
    %v1144 = vsel %vm1078, %v959, %v1143
    %v1145 = vsel %vm1080, %v969, %v1144
    %v1146 = vsel %vm1082, %v979, %v1145
    %v1157 = vmax.f32 %v1083, 0.0
    %v1158 = vmax.f32 %v1090, 0.0
    %v1159 = vmax.f32 %v1097, 0.0
    %v1160 = vmax.f32 %v1104, 0.0
    %v1161 = vmax.f32 %v1111, 0.0
    %v1162 = vmax.f32 %v1118, 0.0
    %v1163 = vmax.f32 %v1125, 0.0
    %v1164 = vmax.f32 %v1132, 0.0
    %v1165 = vmax.f32 %v1139, 0.0
    %v1166 = vmax.f32 %v1146, 0.0
    %v1167 = vmax.f32 %v980, 0.0
    %v1168 = vmax.f32 %v981, 0.0
    %v1169 = vmax.f32 %v982, 0.0
    %v1170 = vmax.f32 %v983, 0.0
    %v1171 = vmax.f32 %v984, 0.0
    %v1172 = vmax.f32 %v985, 0.0
    %v1173 = vmax.f32 %v986, 0.0
    %v1174 = vmax.f32 %v987, 0.0
    %v1175 = vmax.f32 %v988, 0.0
    %v1176 = vmax.f32 %v989, 0.0
    %v1177 = vld [vmem:[#allocation7] sm:$0xff]
    %v1178 = vld [vmem:[#allocation7 + $0x8] sm:$0xff]
    %v1179 = vld [vmem:[#allocation7 + $0x10] sm:$0xff]
    %v1180 = vld [vmem:[#allocation7 + $0x18] sm:$0xff]
    %v1181 = vld [vmem:[#allocation7 + $0x20] sm:$0xff]
    %v1182 = vld [vmem:[#allocation7 + $0x28] sm:$0xff]
    %v1183 = vld [vmem:[#allocation7 + $0x30] sm:$0xff]
    %v1184 = vld [vmem:[#allocation7 + $0x38] sm:$0xff]
    %v1185 = vld [vmem:[#allocation7 + $0x40] sm:$0xff]
    %v1186 = vld [vmem:[#allocation7 + $0x48] sm:$0xff]
    %v1187 = vld [vmem:[#allocation7 + $0x50] sm:$0xff]
    %v1188 = vld [vmem:[#allocation7 + $0x58] sm:$0xff]
    %v1189 = vld [vmem:[#allocation7 + $0x60] sm:$0xff]
    %v1190 = vld [vmem:[#allocation7 + $0x68] sm:$0xff]
    %v1191 = vld [vmem:[#allocation7 + $0x70] sm:$0xff]
    %v1192 = vld [vmem:[#allocation7 + $0x78] sm:$0xff]
    %v1193 = vld [vmem:[#allocation7 + $0x80] sm:$0xff]
    %v1194 = vld [vmem:[#allocation7 + $0x88] sm:$0xff]
    %v1195 = vld [vmem:[#allocation7 + $0x90] sm:$0xff]
    %v1196 = vld [vmem:[#allocation7 + $0x98] sm:$0xff]
    %v1197 = vld [vmem:[#allocation7 + $0xa0] sm:$0xff]
    %v1198 = vld [vmem:[#allocation7 + $0xa8] sm:$0xff]
    %v1199 = vld [vmem:[#allocation7 + $0xb0] sm:$0xff]
    %v1200 = vld [vmem:[#allocation7 + $0xb8] sm:$0xff]
    %v1201 = vld [vmem:[#allocation7 + $0xc0] sm:$0xff]
    %v1202 = vld [vmem:[#allocation7 + $0xc8] sm:$0xff]
    %v1203 = vld [vmem:[#allocation7 + $0xd0] sm:$0xff]
    %v1204 = vld [vmem:[#allocation7 + $0xd8] sm:$0xff]
    %v1205 = vld [vmem:[#allocation7 + $0xe0] sm:$0xff]
    %v1206 = vld [vmem:[#allocation7 + $0xe8] sm:$0xff]
    %v1207 = vld [vmem:[#allocation7 + $0xf0] sm:$0xff]
    %v1208 = vld [vmem:[#allocation7 + $0xf8] sm:$0xff]
    %v1209 = vld [vmem:[#allocation7 + $0x100] sm:$0xff]
    %v1210 = vld [vmem:[#allocation7 + $0x108] sm:$0xff]
    %v1211 = vld [vmem:[#allocation7 + $0x110] sm:$0xff]
    %v1212 = vld [vmem:[#allocation7 + $0x118] sm:$0xff]
    %v1213 = vld [vmem:[#allocation7 + $0x120] sm:$0xff]
    %v1214 = vld [vmem:[#allocation7 + $0x128] sm:$0xff]
    %v1215 = vld [vmem:[#allocation7 + $0x130] sm:$0xff]
    %v1216 = vld [vmem:[#allocation7 + $0x138] sm:$0xff]
    %v1217 = vld [vmem:[#allocation7 + $0x140] sm:$0xff]
    %v1218 = vld [vmem:[#allocation7 + $0x148] sm:$0xff]
    %v1219 = vld [vmem:[#allocation7 + $0x150] sm:$0xff]
    %v1220 = vld [vmem:[#allocation7 + $0x158] sm:$0xff]
    %v1221 = vld [vmem:[#allocation7 + $0x160] sm:$0xff]
    %v1222 = vld [vmem:[#allocation7 + $0x168] sm:$0xff]
    %v1223 = vld [vmem:[#allocation7 + $0x170] sm:$0xff]
    %v1224 = vld [vmem:[#allocation7 + $0x178] sm:$0xff]
    %v1225 = vld [vmem:[#allocation7 + $0x180] sm:$0xff]
    %v1226 = vld [vmem:[#allocation7 + $0x188] sm:$0xff]
    %v1227 = vld [vmem:[#allocation7 + $0x190] sm:$0xff]
    %v1228 = vld [vmem:[#allocation7 + $0x198] sm:$0xff]
    %v1229 = vld [vmem:[#allocation7 + $0x1a0] sm:$0xff]
    %v1230 = vld [vmem:[#allocation7 + $0x1a8] sm:$0xff]
    %v1231 = vld [vmem:[#allocation7 + $0x1b0] sm:$0xff]
    %v1232 = vld [vmem:[#allocation7 + $0x1b8] sm:$0xff]
    %v1233 = vld [vmem:[#allocation7 + $0x1c0] sm:$0xff]
    %v1234 = vld [vmem:[#allocation7 + $0x1c8] sm:$0xff]
    %v1235 = vld [vmem:[#allocation7 + $0x1d0] sm:$0xff]
    %v1236 = vld [vmem:[#allocation7 + $0x1d8] sm:$0xff]
    %v1237 = vld [vmem:[#allocation7 + $0x1e0] sm:$0xff]
    %v1238 = vld [vmem:[#allocation7 + $0x1e8] sm:$0xff]
    %v1239 = vld [vmem:[#allocation7 + $0x1f0] sm:$0xff]
    %v1240 = vld [vmem:[#allocation7 + $0x1f8] sm:$0xff]
    %v1241 = vld [vmem:[#allocation7 + $0x200] sm:$0xff]
    %v1242 = vld [vmem:[#allocation7 + $0x208] sm:$0xff]
    %v1243 = vld [vmem:[#allocation7 + $0x210] sm:$0xff]
    %v1244 = vld [vmem:[#allocation7 + $0x218] sm:$0xff]
    %v1245 = vld [vmem:[#allocation7 + $0x220] sm:$0xff]
    %v1246 = vld [vmem:[#allocation7 + $0x228] sm:$0xff]
    %v1247 = vld [vmem:[#allocation7 + $0x230] sm:$0xff]
    %v1248 = vld [vmem:[#allocation7 + $0x238] sm:$0xff]
    %v1249 = vld [vmem:[#allocation7 + $0x240] sm:$0xff]
    %v1250 = vld [vmem:[#allocation7 + $0x248] sm:$0xff]
    %v1251 = vld [vmem:[#allocation7 + $0x250] sm:$0xff]
    %v1252 = vld [vmem:[#allocation7 + $0x258] sm:$0xff]
    %v1253 = vld [vmem:[#allocation7 + $0x260] sm:$0xff]
    %v1254 = vld [vmem:[#allocation7 + $0x268] sm:$0xff]
    %v1255 = vld [vmem:[#allocation7 + $0x270] sm:$0xff]
    %v1256 = vld [vmem:[#allocation7 + $0x278] sm:$0xff]
    %v1257 = vld [vmem:[#allocation7 + $0x280] sm:$0xff]
    %v1258 = vld [vmem:[#allocation7 + $0x288] sm:$0xff]
    %v1259 = vld [vmem:[#allocation7 + $0x290] sm:$0xff]
    %v1260 = vld [vmem:[#allocation7 + $0x298] sm:$0xff]
    %v1261 = vld [vmem:[#allocation7 + $0x2a0] sm:$0xff]
    %v1262 = vld [vmem:[#allocation7 + $0x2a8] sm:$0xff]
    %v1263 = vld [vmem:[#allocation7 + $0x2b0] sm:$0xff]
    %v1264 = vld [vmem:[#allocation7 + $0x2b8] sm:$0xff]
    %v1265 = vld [vmem:[#allocation7 + $0x2c0] sm:$0xff]
    %v1266 = vld [vmem:[#allocation7 + $0x2c8] sm:$0xff]
    %v1267 = vld [vmem:[#allocation7 + $0x2d0] sm:$0xff]
    %v1268 = vld [vmem:[#allocation7 + $0x2d8] sm:$0xff]
    %v1269 = vld [vmem:[#allocation7 + $0x2e0] sm:$0xff]
    %v1270 = vld [vmem:[#allocation7 + $0x2e8] sm:$0xff]
    %v1271 = vld [vmem:[#allocation7 + $0x2f0] sm:$0xff]
    %v1272 = vld [vmem:[#allocation7 + $0x2f8] sm:$0xff]
    %v1273 = vld [vmem:[#allocation7 + $0x300] sm:$0xff]
    %v1274 = vld [vmem:[#allocation7 + $0x308] sm:$0xff]
    %v1275 = vld [vmem:[#allocation7 + $0x310] sm:$0xff]
    %v1276 = vld [vmem:[#allocation7 + $0x318] sm:$0xff]
    %v1277 = vld [vmem:[#allocation7 + $0x320] sm:$0xff]
    %v1278 = vld [vmem:[#allocation7 + $0x328] sm:$0xff]
    %v1279 = vld [vmem:[#allocation7 + $0x330] sm:$0xff]
    %v1280 = vld [vmem:[#allocation7 + $0x338] sm:$0xff]
    %v1281 = vld [vmem:[#allocation7 + $0x340] sm:$0xff]
    %v1282 = vld [vmem:[#allocation7 + $0x348] sm:$0xff]
    %v1283 = vld [vmem:[#allocation7 + $0x350] sm:$0xff]
    %v1284 = vld [vmem:[#allocation7 + $0x358] sm:$0xff]
    %v1285 = vld [vmem:[#allocation7 + $0x360] sm:$0xff]
    %v1286 = vld [vmem:[#allocation7 + $0x368] sm:$0xff]
    %v1287 = vld [vmem:[#allocation7 + $0x370] sm:$0xff]
    %v1288 = vld [vmem:[#allocation7 + $0x378] sm:$0xff]
    %v1289 = vld [vmem:[#allocation7 + $0x380] sm:$0xff]
    %v1290 = vld [vmem:[#allocation7 + $0x388] sm:$0xff]
    %v1291 = vld [vmem:[#allocation7 + $0x390] sm:$0xff]
    %v1292 = vld [vmem:[#allocation7 + $0x398] sm:$0xff]
    %v1293 = vld [vmem:[#allocation7 + $0x3a0] sm:$0xff]
    %v1294 = vld [vmem:[#allocation7 + $0x3a8] sm:$0xff]
    %v1295 = vld [vmem:[#allocation7 + $0x3b0] sm:$0xff]
    %v1296 = vld [vmem:[#allocation7 + $0x3b8] sm:$0xff]
    %v1297 = vld [vmem:[#allocation7 + $0x3c0] sm:$0xff]
    %v1298 = vld [vmem:[#allocation7 + $0x3c8] sm:$0xff]
    %v1299 = vld [vmem:[#allocation7 + $0x3d0] sm:$0xff]
    %v1300 = vld [vmem:[#allocation7 + $0x3d8] sm:$0xff]
    %v1301 = vld [vmem:[#allocation7 + $0x3e0] sm:$0xff]
    %v1302 = vld [vmem:[#allocation7 + $0x3e8] sm:$0xff]
    %v1303 = vld [vmem:[#allocation7 + $0x3f0] sm:$0xff]
    %v1304 = vld [vmem:[#allocation7 + $0x3f8] sm:$0xff]
    %v1305 = vld [vmem:[#allocation7 + $0x400] sm:$0xff]
    %v1306 = vld [vmem:[#allocation7 + $0x408] sm:$0xff]
    %v1307 = vld [vmem:[#allocation7 + $0x410] sm:$0xff]
    %v1308 = vld [vmem:[#allocation7 + $0x418] sm:$0xff]
    %v1309 = vld [vmem:[#allocation7 + $0x420] sm:$0xff]
    %v1310 = vld [vmem:[#allocation7 + $0x428] sm:$0xff]
    %v1311 = vld [vmem:[#allocation7 + $0x430] sm:$0xff]
    %v1312 = vld [vmem:[#allocation7 + $0x438] sm:$0xff]
    %v1313 = vld [vmem:[#allocation7 + $0x440] sm:$0xff]
    %v1314 = vld [vmem:[#allocation7 + $0x448] sm:$0xff]
    %v1315 = vld [vmem:[#allocation7 + $0x450] sm:$0xff]
    %v1316 = vld [vmem:[#allocation7 + $0x458] sm:$0xff]
    %v1317 = vld [vmem:[#allocation7 + $0x460] sm:$0xff]
    %v1318 = vld [vmem:[#allocation7 + $0x468] sm:$0xff]
    %v1319 = vld [vmem:[#allocation7 + $0x470] sm:$0xff]
    %v1320 = vld [vmem:[#allocation7 + $0x478] sm:$0xff]
    %v1321 = vld [vmem:[#allocation7 + $0x480] sm:$0xff]
    %v1322 = vld [vmem:[#allocation7 + $0x488] sm:$0xff]
    %v1323 = vld [vmem:[#allocation7 + $0x490] sm:$0xff]
    %v1324 = vld [vmem:[#allocation7 + $0x498] sm:$0xff]
    %v1325 = vld [vmem:[#allocation7 + $0x4a0] sm:$0xff]
    %v1326 = vld [vmem:[#allocation7 + $0x4a8] sm:$0xff]
    %v1327 = vld [vmem:[#allocation7 + $0x4b0] sm:$0xff]
    %v1328 = vld [vmem:[#allocation7 + $0x4b8] sm:$0xff]
    %v1329 = vld [vmem:[#allocation7 + $0x4c0] sm:$0xff]
    %v1330 = vld [vmem:[#allocation7 + $0x4c8] sm:$0xff]
    %v1331 = vld [vmem:[#allocation7 + $0x4d0] sm:$0xff]
    %v1332 = vld [vmem:[#allocation7 + $0x4d8] sm:$0xff]
    %v1333 = vld [vmem:[#allocation7 + $0x4e0] sm:$0xff]
    %v1334 = vld [vmem:[#allocation7 + $0x4e8] sm:$0xff]
    %v1335 = vld [vmem:[#allocation7 + $0x4f0] sm:$0xff]
    %v1336 = vld [vmem:[#allocation7 + $0x4f8] sm:$0xff]
    %v1337 = vld [vmem:[%s3] sm:$0x3]
    %v1338 = vld [vmem:[#allocation8] sm:$0xf]
    %v1339 = vld [vmem:[#allocation8 + $0x4] sm:$0xf]
    %v1340 = vld [vmem:[#allocation8 + $0x8] sm:$0xf]
    %v1341 = vld [vmem:[#allocation8 + $0xc] sm:$0xf]
    %v1342 = vld [vmem:[#allocation8 + $0x10] sm:$0xf]
    %v1343 = vld [vmem:[#allocation8 + $0x14] sm:$0xf]
    %v1344 = vld [vmem:[#allocation8 + $0x18] sm:$0xf]
    %v1345 = vld [vmem:[#allocation8 + $0x1c] sm:$0xf]
    %v1346 = vld [vmem:[#allocation8 + $0x20] sm:$0xf]
    %v1347 = vld [vmem:[#allocation8 + $0x24] sm:$0xf]
    %v1348 = vld [vmem:[#allocation8 + $0x28] sm:$0xf]
    %v1349 = vld [vmem:[#allocation8 + $0x2c] sm:$0xf]
    %v1350 = vld [vmem:[#allocation8 + $0x30] sm:$0xf]
    %v1351 = vld [vmem:[#allocation8 + $0x34] sm:$0xf]
    %v1352 = vld [vmem:[#allocation8 + $0x38] sm:$0xf]
    %v1353 = vld [vmem:[#allocation8 + $0x3c] sm:$0xf]
    %v1354 = vld [vmem:[#allocation8 + $0x40] sm:$0xf]
    %v1355 = vld [vmem:[#allocation8 + $0x44] sm:$0xf]
    %v1356 = vld [vmem:[#allocation8 + $0x48] sm:$0xf]
    %v1357 = vld [vmem:[#allocation8 + $0x4c] sm:$0xf]
    %v1358 = vld [vmem:[#allocation8 + $0x50] sm:$0xf]
    %v1359 = vld [vmem:[#allocation8 + $0x54] sm:$0xf]
    %v1360 = vld [vmem:[#allocation8 + $0x58] sm:$0xf]
    %v1361 = vld [vmem:[#allocation8 + $0x5c] sm:$0xf]
    %v1362 = vld [vmem:[#allocation8 + $0x60] sm:$0xf]
    %v1363 = vld [vmem:[#allocation8 + $0x64] sm:$0xf]
    %v1364 = vld [vmem:[#allocation8 + $0x68] sm:$0xf]
    %v1365 = vld [vmem:[#allocation8 + $0x6c] sm:$0xf]
    %v1366 = vld [vmem:[#allocation8 + $0x70] sm:$0xf]
    %v1367 = vld [vmem:[#allocation8 + $0x74] sm:$0xf]
    %v1368 = vld [vmem:[#allocation8 + $0x78] sm:$0xf]
    %v1369 = vld [vmem:[#allocation8 + $0x7c] sm:$0xf]
    %v1370 = vld [vmem:[%s5] sm:$0x1]
    %v1371 = vld [vmem:[#allocation10] sm:$0xf]
    %v1372 = vld [vmem:[#allocation10 + $0x4] sm:$0xf]
    %v1373 = vld [vmem:[#allocation10 + $0x8] sm:$0xf]
    %v1374 = vld [vmem:[#allocation10 + $0xc] sm:$0xf]
    %v1375 = vld [vmem:[#allocation10 + $0x10] sm:$0xf]
    %v1376 = vld [vmem:[#allocation10 + $0x14] sm:$0xf]
    %v1377 = vld [vmem:[#allocation10 + $0x18] sm:$0xf]
    %v1378 = vld [vmem:[#allocation10 + $0x1c] sm:$0xf]
    %v1379 = vld [vmem:[#allocation10 + $0x20] sm:$0xf]
    %v1380 = vld [vmem:[#allocation10 + $0x24] sm:$0xf]
    %v1381 = vld [vmem:[#allocation10 + $0x28] sm:$0xf]
    %v1382 = vld [vmem:[#allocation10 + $0x2c] sm:$0xf]
    %v1383 = vld [vmem:[#allocation10 + $0x30] sm:$0xf]
    %v1384 = vld [vmem:[#allocation10 + $0x34] sm:$0xf]
    %v1385 = vld [vmem:[#allocation10 + $0x38] sm:$0xf]
    %v1386 = vld [vmem:[#allocation10 + $0x3c] sm:$0xf]
    %v1387 = vld [vmem:[%s7] sm:$0x1]
    %v1388 = vpack.c.bf16 %v1167, %v1157
    %v1389 = vpack.c.bf16 %v1168, %v1158
    %v1390 = vpack.c.bf16 %v1169, %v1159
    %v1391 = vpack.c.bf16 %v1170, %v1160
    %v1392 = vpack.c.bf16 %v1171, %v1161
    %v1393 = vpack.c.bf16 %v1172, %v1162
    %v1394 = vpack.c.bf16 %v1173, %v1163
    %v1395 = vpack.c.bf16 %v1174, %v1164
    %v1396 = vpack.c.bf16 %v1175, %v1165
    %v1397 = vpack.c.bf16 %v1176, %v1166
    %v1399 = vlaneseq
    %v1400 = vshrl.u32 %v1399, 7
    %v1401 = vsub.s32 0, %v1400
    %v1402 = vrot.slane %v1337, %v1401
    %v1403 = vlaneseq
    %v1404 = vshrl.u32 %v1403, 7
    %v1405 = vsub.s32 1, %v1404
    %v1406 = vrot.slane %v1337, %v1405
    %v1569 = vunpack.c.l.b16 %v1177
    %v1570 = vunpack.c.h.b16 %v1177
    %v1571 = vunpack.c.l.b16 %v1178
    %v1572 = vunpack.c.h.b16 %v1178
    %v1573 = vunpack.c.l.b16 %v1179
    %v1574 = vunpack.c.h.b16 %v1179
    %v1575 = vunpack.c.l.b16 %v1180
    %v1576 = vunpack.c.h.b16 %v1180
    %v1577 = vunpack.c.l.b16 %v1181
    %v1578 = vunpack.c.h.b16 %v1181
    %v1579 = vunpack.c.l.b16 %v1182
    %v1580 = vunpack.c.h.b16 %v1182
    %v1581 = vunpack.c.l.b16 %v1183
    %v1582 = vunpack.c.h.b16 %v1183
    %v1583 = vunpack.c.l.b16 %v1184
    %v1584 = vunpack.c.h.b16 %v1184
    %v1585 = vunpack.c.l.b16 %v1185
    %v1586 = vunpack.c.h.b16 %v1185
    %v1587 = vunpack.c.l.b16 %v1186
    %v1588 = vunpack.c.h.b16 %v1186
    %v1589 = vunpack.c.l.b16 %v1187
    %v1590 = vunpack.c.h.b16 %v1187
    %v1591 = vunpack.c.l.b16 %v1188
    %v1592 = vunpack.c.h.b16 %v1188
    %v1593 = vunpack.c.l.b16 %v1189
    %v1594 = vunpack.c.h.b16 %v1189
    %v1595 = vunpack.c.l.b16 %v1190
    %v1596 = vunpack.c.h.b16 %v1190
    %v1597 = vunpack.c.l.b16 %v1191
    %v1598 = vunpack.c.h.b16 %v1191
    %v1599 = vunpack.c.l.b16 %v1192
    %v1600 = vunpack.c.h.b16 %v1192
    %v1601 = vunpack.c.l.b16 %v1193
    %v1602 = vunpack.c.h.b16 %v1193
    %v1603 = vunpack.c.l.b16 %v1194
    %v1604 = vunpack.c.h.b16 %v1194
    %v1605 = vunpack.c.l.b16 %v1195
    %v1606 = vunpack.c.h.b16 %v1195
    %v1607 = vunpack.c.l.b16 %v1196
    %v1608 = vunpack.c.h.b16 %v1196
    %v1609 = vunpack.c.l.b16 %v1197
    %v1610 = vunpack.c.h.b16 %v1197
    %v1611 = vunpack.c.l.b16 %v1198
    %v1612 = vunpack.c.h.b16 %v1198
    %v1613 = vunpack.c.l.b16 %v1199
    %v1614 = vunpack.c.h.b16 %v1199
    %v1615 = vunpack.c.l.b16 %v1200
    %v1616 = vunpack.c.h.b16 %v1200
    %v1617 = vunpack.c.l.b16 %v1201
    %v1618 = vunpack.c.h.b16 %v1201
    %v1619 = vunpack.c.l.b16 %v1202
    %v1620 = vunpack.c.h.b16 %v1202
    %v1621 = vunpack.c.l.b16 %v1203
    %v1622 = vunpack.c.h.b16 %v1203
    %v1623 = vunpack.c.l.b16 %v1204
    %v1624 = vunpack.c.h.b16 %v1204
    %v1625 = vunpack.c.l.b16 %v1205
    %v1626 = vunpack.c.h.b16 %v1205
    %v1627 = vunpack.c.l.b16 %v1206
    %v1628 = vunpack.c.h.b16 %v1206
    %v1629 = vunpack.c.l.b16 %v1207
    %v1630 = vunpack.c.h.b16 %v1207
    %v1631 = vunpack.c.l.b16 %v1208
    %v1632 = vunpack.c.h.b16 %v1208
    %v1633 = vunpack.c.l.b16 %v1209
    %v1634 = vunpack.c.h.b16 %v1209
    %v1635 = vunpack.c.l.b16 %v1210
    %v1636 = vunpack.c.h.b16 %v1210
    %v1637 = vunpack.c.l.b16 %v1211
    %v1638 = vunpack.c.h.b16 %v1211
    %v1639 = vunpack.c.l.b16 %v1212
    %v1640 = vunpack.c.h.b16 %v1212
    %v1641 = vunpack.c.l.b16 %v1213
    %v1642 = vunpack.c.h.b16 %v1213
    %v1643 = vunpack.c.l.b16 %v1214
    %v1644 = vunpack.c.h.b16 %v1214
    %v1645 = vunpack.c.l.b16 %v1215
    %v1646 = vunpack.c.h.b16 %v1215
    %v1647 = vunpack.c.l.b16 %v1216
    %v1648 = vunpack.c.h.b16 %v1216
    %v1649 = vunpack.c.l.b16 %v1217
    %v1650 = vunpack.c.h.b16 %v1217
    %v1651 = vunpack.c.l.b16 %v1218
    %v1652 = vunpack.c.h.b16 %v1218
    %v1653 = vunpack.c.l.b16 %v1219
    %v1654 = vunpack.c.h.b16 %v1219
    %v1655 = vunpack.c.l.b16 %v1220
    %v1656 = vunpack.c.h.b16 %v1220
    %v1657 = vunpack.c.l.b16 %v1221
    %v1658 = vunpack.c.h.b16 %v1221
    %v1659 = vunpack.c.l.b16 %v1222
    %v1660 = vunpack.c.h.b16 %v1222
    %v1661 = vunpack.c.l.b16 %v1223
    %v1662 = vunpack.c.h.b16 %v1223
    %v1663 = vunpack.c.l.b16 %v1224
    %v1664 = vunpack.c.h.b16 %v1224
    %v1665 = vunpack.c.l.b16 %v1225
    %v1666 = vunpack.c.h.b16 %v1225
    %v1667 = vunpack.c.l.b16 %v1226
    %v1668 = vunpack.c.h.b16 %v1226
    %v1669 = vunpack.c.l.b16 %v1227
    %v1670 = vunpack.c.h.b16 %v1227
    %v1671 = vunpack.c.l.b16 %v1228
    %v1672 = vunpack.c.h.b16 %v1228
    %v1673 = vunpack.c.l.b16 %v1229
    %v1674 = vunpack.c.h.b16 %v1229
    %v1675 = vunpack.c.l.b16 %v1230
    %v1676 = vunpack.c.h.b16 %v1230
    %v1677 = vunpack.c.l.b16 %v1231
    %v1678 = vunpack.c.h.b16 %v1231
    %v1679 = vunpack.c.l.b16 %v1232
    %v1680 = vunpack.c.h.b16 %v1232
    %v1681 = vunpack.c.l.b16 %v1233
    %v1682 = vunpack.c.h.b16 %v1233
    %v1683 = vunpack.c.l.b16 %v1234
    %v1684 = vunpack.c.h.b16 %v1234
    %v1685 = vunpack.c.l.b16 %v1235
    %v1686 = vunpack.c.h.b16 %v1235
    %v1687 = vunpack.c.l.b16 %v1236
    %v1688 = vunpack.c.h.b16 %v1236
    %v1689 = vunpack.c.l.b16 %v1237
    %v1690 = vunpack.c.h.b16 %v1237
    %v1691 = vunpack.c.l.b16 %v1238
    %v1692 = vunpack.c.h.b16 %v1238
    %v1693 = vunpack.c.l.b16 %v1239
    %v1694 = vunpack.c.h.b16 %v1239
    %v1695 = vunpack.c.l.b16 %v1240
    %v1696 = vunpack.c.h.b16 %v1240
    %v1697 = vunpack.c.l.b16 %v1241
    %v1698 = vunpack.c.h.b16 %v1241
    %v1699 = vunpack.c.l.b16 %v1242
    %v1700 = vunpack.c.h.b16 %v1242
    %v1701 = vunpack.c.l.b16 %v1243
    %v1702 = vunpack.c.h.b16 %v1243
    %v1703 = vunpack.c.l.b16 %v1244
    %v1704 = vunpack.c.h.b16 %v1244
    %v1705 = vunpack.c.l.b16 %v1245
    %v1706 = vunpack.c.h.b16 %v1245
    %v1707 = vunpack.c.l.b16 %v1246
    %v1708 = vunpack.c.h.b16 %v1246
    %v1709 = vunpack.c.l.b16 %v1247
    %v1710 = vunpack.c.h.b16 %v1247
    %v1711 = vunpack.c.l.b16 %v1248
    %v1712 = vunpack.c.h.b16 %v1248
    %v1713 = vunpack.c.l.b16 %v1249
    %v1714 = vunpack.c.h.b16 %v1249
    %v1715 = vunpack.c.l.b16 %v1250
    %v1716 = vunpack.c.h.b16 %v1250
    %v1717 = vunpack.c.l.b16 %v1251
    %v1718 = vunpack.c.h.b16 %v1251
    %v1719 = vunpack.c.l.b16 %v1252
    %v1720 = vunpack.c.h.b16 %v1252
    %v1721 = vunpack.c.l.b16 %v1253
    %v1722 = vunpack.c.h.b16 %v1253
    %v1723 = vunpack.c.l.b16 %v1254
    %v1724 = vunpack.c.h.b16 %v1254
    %v1725 = vunpack.c.l.b16 %v1255
    %v1726 = vunpack.c.h.b16 %v1255
    %v1727 = vunpack.c.l.b16 %v1256
    %v1728 = vunpack.c.h.b16 %v1256
    %v1729 = vunpack.c.l.b16 %v1257
    %v1730 = vunpack.c.h.b16 %v1257
    %v1731 = vunpack.c.l.b16 %v1258
    %v1732 = vunpack.c.h.b16 %v1258
    %v1733 = vunpack.c.l.b16 %v1259
    %v1734 = vunpack.c.h.b16 %v1259
    %v1735 = vunpack.c.l.b16 %v1260
    %v1736 = vunpack.c.h.b16 %v1260
    %v1737 = vunpack.c.l.b16 %v1261
    %v1738 = vunpack.c.h.b16 %v1261
    %v1739 = vunpack.c.l.b16 %v1262
    %v1740 = vunpack.c.h.b16 %v1262
    %v1741 = vunpack.c.l.b16 %v1263
    %v1742 = vunpack.c.h.b16 %v1263
    %v1743 = vunpack.c.l.b16 %v1264
    %v1744 = vunpack.c.h.b16 %v1264
    %v1745 = vunpack.c.l.b16 %v1265
    %v1746 = vunpack.c.h.b16 %v1265
    %v1747 = vunpack.c.l.b16 %v1266
    %v1748 = vunpack.c.h.b16 %v1266
    %v1749 = vunpack.c.l.b16 %v1267
    %v1750 = vunpack.c.h.b16 %v1267
    %v1751 = vunpack.c.l.b16 %v1268
    %v1752 = vunpack.c.h.b16 %v1268
    %v1753 = vunpack.c.l.b16 %v1269
    %v1754 = vunpack.c.h.b16 %v1269
    %v1755 = vunpack.c.l.b16 %v1270
    %v1756 = vunpack.c.h.b16 %v1270
    %v1757 = vunpack.c.l.b16 %v1271
    %v1758 = vunpack.c.h.b16 %v1271
    %v1759 = vunpack.c.l.b16 %v1272
    %v1760 = vunpack.c.h.b16 %v1272
    %v1761 = vunpack.c.l.b16 %v1273
    %v1762 = vunpack.c.h.b16 %v1273
    %v1763 = vunpack.c.l.b16 %v1274
    %v1764 = vunpack.c.h.b16 %v1274
    %v1765 = vunpack.c.l.b16 %v1275
    %v1766 = vunpack.c.h.b16 %v1275
    %v1767 = vunpack.c.l.b16 %v1276
    %v1768 = vunpack.c.h.b16 %v1276
    %v1769 = vunpack.c.l.b16 %v1277
    %v1770 = vunpack.c.h.b16 %v1277
    %v1771 = vunpack.c.l.b16 %v1278
    %v1772 = vunpack.c.h.b16 %v1278
    %v1773 = vunpack.c.l.b16 %v1279
    %v1774 = vunpack.c.h.b16 %v1279
    %v1775 = vunpack.c.l.b16 %v1280
    %v1776 = vunpack.c.h.b16 %v1280
    %v1777 = vunpack.c.l.b16 %v1281
    %v1778 = vunpack.c.h.b16 %v1281
    %v1779 = vunpack.c.l.b16 %v1282
    %v1780 = vunpack.c.h.b16 %v1282
    %v1781 = vunpack.c.l.b16 %v1283
    %v1782 = vunpack.c.h.b16 %v1283
    %v1783 = vunpack.c.l.b16 %v1284
    %v1784 = vunpack.c.h.b16 %v1284
    %v1785 = vunpack.c.l.b16 %v1285
    %v1786 = vunpack.c.h.b16 %v1285
    %v1787 = vunpack.c.l.b16 %v1286
    %v1788 = vunpack.c.h.b16 %v1286
    %v1789 = vunpack.c.l.b16 %v1287
    %v1790 = vunpack.c.h.b16 %v1287
    %v1791 = vunpack.c.l.b16 %v1288
    %v1792 = vunpack.c.h.b16 %v1288
    %v1793 = vunpack.c.l.b16 %v1289
    %v1794 = vunpack.c.h.b16 %v1289
    %v1795 = vunpack.c.l.b16 %v1290
    %v1796 = vunpack.c.h.b16 %v1290
    %v1797 = vunpack.c.l.b16 %v1291
    %v1798 = vunpack.c.h.b16 %v1291
    %v1799 = vunpack.c.l.b16 %v1292
    %v1800 = vunpack.c.h.b16 %v1292
    %v1801 = vunpack.c.l.b16 %v1293
    %v1802 = vunpack.c.h.b16 %v1293
    %v1803 = vunpack.c.l.b16 %v1294
    %v1804 = vunpack.c.h.b16 %v1294
    %v1805 = vunpack.c.l.b16 %v1295
    %v1806 = vunpack.c.h.b16 %v1295
    %v1807 = vunpack.c.l.b16 %v1296
    %v1808 = vunpack.c.h.b16 %v1296
    %v1809 = vunpack.c.l.b16 %v1297
    %v1810 = vunpack.c.h.b16 %v1297
    %v1811 = vunpack.c.l.b16 %v1298
    %v1812 = vunpack.c.h.b16 %v1298
    %v1813 = vunpack.c.l.b16 %v1299
    %v1814 = vunpack.c.h.b16 %v1299
    %v1815 = vunpack.c.l.b16 %v1300
    %v1816 = vunpack.c.h.b16 %v1300
    %v1817 = vunpack.c.l.b16 %v1301
    %v1818 = vunpack.c.h.b16 %v1301
    %v1819 = vunpack.c.l.b16 %v1302
    %v1820 = vunpack.c.h.b16 %v1302
    %v1821 = vunpack.c.l.b16 %v1303
    %v1822 = vunpack.c.h.b16 %v1303
    %v1823 = vunpack.c.l.b16 %v1304
    %v1824 = vunpack.c.h.b16 %v1304
    %v1825 = vunpack.c.l.b16 %v1305
    %v1826 = vunpack.c.h.b16 %v1305
    %v1827 = vunpack.c.l.b16 %v1306
    %v1828 = vunpack.c.h.b16 %v1306
    %v1829 = vunpack.c.l.b16 %v1307
    %v1830 = vunpack.c.h.b16 %v1307
    %v1831 = vunpack.c.l.b16 %v1308
    %v1832 = vunpack.c.h.b16 %v1308
    %v1833 = vunpack.c.l.b16 %v1309
    %v1834 = vunpack.c.h.b16 %v1309
    %v1835 = vunpack.c.l.b16 %v1310
    %v1836 = vunpack.c.h.b16 %v1310
    %v1837 = vunpack.c.l.b16 %v1311
    %v1838 = vunpack.c.h.b16 %v1311
    %v1839 = vunpack.c.l.b16 %v1312
    %v1840 = vunpack.c.h.b16 %v1312
    %v1841 = vunpack.c.l.b16 %v1313
    %v1842 = vunpack.c.h.b16 %v1313
    %v1843 = vunpack.c.l.b16 %v1314
    %v1844 = vunpack.c.h.b16 %v1314
    %v1845 = vunpack.c.l.b16 %v1315
    %v1846 = vunpack.c.h.b16 %v1315
    %v1847 = vunpack.c.l.b16 %v1316
    %v1848 = vunpack.c.h.b16 %v1316
    %v1849 = vunpack.c.l.b16 %v1317
    %v1850 = vunpack.c.h.b16 %v1317
    %v1851 = vunpack.c.l.b16 %v1318
    %v1852 = vunpack.c.h.b16 %v1318
    %v1853 = vunpack.c.l.b16 %v1319
    %v1854 = vunpack.c.h.b16 %v1319
    %v1855 = vunpack.c.l.b16 %v1320
    %v1856 = vunpack.c.h.b16 %v1320
    %v1857 = vunpack.c.l.b16 %v1321
    %v1858 = vunpack.c.h.b16 %v1321
    %v1859 = vunpack.c.l.b16 %v1322
    %v1860 = vunpack.c.h.b16 %v1322
    %v1861 = vunpack.c.l.b16 %v1323
    %v1862 = vunpack.c.h.b16 %v1323
    %v1863 = vunpack.c.l.b16 %v1324
    %v1864 = vunpack.c.h.b16 %v1324
    %v1865 = vunpack.c.l.b16 %v1325
    %v1866 = vunpack.c.h.b16 %v1325
    %v1867 = vunpack.c.l.b16 %v1326
    %v1868 = vunpack.c.h.b16 %v1326
    %v1869 = vunpack.c.l.b16 %v1327
    %v1870 = vunpack.c.h.b16 %v1327
    %v1871 = vunpack.c.l.b16 %v1328
    %v1872 = vunpack.c.h.b16 %v1328
    %v1873 = vunpack.c.l.b16 %v1329
    %v1874 = vunpack.c.h.b16 %v1329
    %v1875 = vunpack.c.l.b16 %v1330
    %v1876 = vunpack.c.h.b16 %v1330
    %v1877 = vunpack.c.l.b16 %v1331
    %v1878 = vunpack.c.h.b16 %v1331
    %v1879 = vunpack.c.l.b16 %v1332
    %v1880 = vunpack.c.h.b16 %v1332
    %v1881 = vunpack.c.l.b16 %v1333
    %v1882 = vunpack.c.h.b16 %v1333
    %v1883 = vunpack.c.l.b16 %v1334
    %v1884 = vunpack.c.h.b16 %v1334
    %v1885 = vunpack.c.l.b16 %v1335
    %v1886 = vunpack.c.h.b16 %v1335
    %v1887 = vunpack.c.l.b16 %v1336
    %v1888 = vunpack.c.h.b16 %v1336
    %v1889 = vpack.c.b16 %v1571, %v1569
    %v1890 = vpack.c.b16 %v1572, %v1570
    %v1891 = vpack.c.b16 %v1575, %v1573
    %v1892 = vpack.c.b16 %v1576, %v1574
    %v1893 = vpack.c.b16 %v1579, %v1577
    %v1894 = vpack.c.b16 %v1580, %v1578
    %v1895 = vpack.c.b16 %v1583, %v1581
    %v1896 = vpack.c.b16 %v1584, %v1582
    %v1897 = vpack.c.b16 %v1587, %v1585
    %v1898 = vpack.c.b16 %v1588, %v1586
    %v1899 = vpack.c.b16 %v1591, %v1589
    %v1900 = vpack.c.b16 %v1592, %v1590
    %v1901 = vpack.c.b16 %v1595, %v1593
    %v1902 = vpack.c.b16 %v1596, %v1594
    %v1903 = vpack.c.b16 %v1599, %v1597
    %v1904 = vpack.c.b16 %v1600, %v1598
    %v1905 = vpack.c.b16 %v1603, %v1601
    %v1906 = vpack.c.b16 %v1604, %v1602
    %v1907 = vpack.c.b16 %v1607, %v1605
    %v1908 = vpack.c.b16 %v1608, %v1606
    %v1909 = vpack.c.b16 %v1611, %v1609
    %v1910 = vpack.c.b16 %v1612, %v1610
    %v1911 = vpack.c.b16 %v1615, %v1613
    %v1912 = vpack.c.b16 %v1616, %v1614
    %v1913 = vpack.c.b16 %v1619, %v1617
    %v1914 = vpack.c.b16 %v1620, %v1618
    %v1915 = vpack.c.b16 %v1623, %v1621
    %v1916 = vpack.c.b16 %v1624, %v1622
    %v1917 = vpack.c.b16 %v1627, %v1625
    %v1918 = vpack.c.b16 %v1628, %v1626
    %v1919 = vpack.c.b16 %v1631, %v1629
    %v1920 = vpack.c.b16 %v1632, %v1630
    %v1921 = vpack.c.b16 %v1635, %v1633
    %v1922 = vpack.c.b16 %v1636, %v1634
    %v1923 = vpack.c.b16 %v1639, %v1637
    %v1924 = vpack.c.b16 %v1640, %v1638
    %v1925 = vpack.c.b16 %v1643, %v1641
    %v1926 = vpack.c.b16 %v1644, %v1642
    %v1927 = vpack.c.b16 %v1647, %v1645
    %v1928 = vpack.c.b16 %v1648, %v1646
    %v1929 = vpack.c.b16 %v1651, %v1649
    %v1930 = vpack.c.b16 %v1652, %v1650
    %v1931 = vpack.c.b16 %v1655, %v1653
    %v1932 = vpack.c.b16 %v1656, %v1654
    %v1933 = vpack.c.b16 %v1659, %v1657
    %v1934 = vpack.c.b16 %v1660, %v1658
    %v1935 = vpack.c.b16 %v1663, %v1661
    %v1936 = vpack.c.b16 %v1664, %v1662
    %v1937 = vpack.c.b16 %v1667, %v1665
    %v1938 = vpack.c.b16 %v1668, %v1666
    %v1939 = vpack.c.b16 %v1671, %v1669
    %v1940 = vpack.c.b16 %v1672, %v1670
    %v1941 = vpack.c.b16 %v1675, %v1673
    %v1942 = vpack.c.b16 %v1676, %v1674
    %v1943 = vpack.c.b16 %v1679, %v1677
    %v1944 = vpack.c.b16 %v1680, %v1678
    %v1945 = vpack.c.b16 %v1683, %v1681
    %v1946 = vpack.c.b16 %v1684, %v1682
    %v1947 = vpack.c.b16 %v1687, %v1685
    %v1948 = vpack.c.b16 %v1688, %v1686
    %v1949 = vpack.c.b16 %v1691, %v1689
    %v1950 = vpack.c.b16 %v1692, %v1690
    %v1951 = vpack.c.b16 %v1695, %v1693
    %v1952 = vpack.c.b16 %v1696, %v1694
    %v1953 = vpack.c.b16 %v1699, %v1697
    %v1954 = vpack.c.b16 %v1700, %v1698
    %v1955 = vpack.c.b16 %v1703, %v1701
    %v1956 = vpack.c.b16 %v1704, %v1702
    %v1957 = vpack.c.b16 %v1707, %v1705
    %v1958 = vpack.c.b16 %v1708, %v1706
    %v1959 = vpack.c.b16 %v1711, %v1709
    %v1960 = vpack.c.b16 %v1712, %v1710
    %v1961 = vpack.c.b16 %v1715, %v1713
    %v1962 = vpack.c.b16 %v1716, %v1714
    %v1963 = vpack.c.b16 %v1719, %v1717
    %v1964 = vpack.c.b16 %v1720, %v1718
    %v1965 = vpack.c.b16 %v1723, %v1721
    %v1966 = vpack.c.b16 %v1724, %v1722
    %v1967 = vpack.c.b16 %v1727, %v1725
    %v1968 = vpack.c.b16 %v1728, %v1726
    %v1969 = vpack.c.b16 %v1731, %v1729
    %v1970 = vpack.c.b16 %v1732, %v1730
    %v1971 = vpack.c.b16 %v1735, %v1733
    %v1972 = vpack.c.b16 %v1736, %v1734
    %v1973 = vpack.c.b16 %v1739, %v1737
    %v1974 = vpack.c.b16 %v1740, %v1738
    %v1975 = vpack.c.b16 %v1743, %v1741
    %v1976 = vpack.c.b16 %v1744, %v1742
    %v1977 = vpack.c.b16 %v1747, %v1745
    %v1978 = vpack.c.b16 %v1748, %v1746
    %v1979 = vpack.c.b16 %v1751, %v1749
    %v1980 = vpack.c.b16 %v1752, %v1750
    %v1981 = vpack.c.b16 %v1755, %v1753
    %v1982 = vpack.c.b16 %v1756, %v1754
    %v1983 = vpack.c.b16 %v1759, %v1757
    %v1984 = vpack.c.b16 %v1760, %v1758
    %v1985 = vpack.c.b16 %v1763, %v1761
    %v1986 = vpack.c.b16 %v1764, %v1762
    %v1987 = vpack.c.b16 %v1767, %v1765
    %v1988 = vpack.c.b16 %v1768, %v1766
    %v1989 = vpack.c.b16 %v1771, %v1769
    %v1990 = vpack.c.b16 %v1772, %v1770
    %v1991 = vpack.c.b16 %v1775, %v1773
    %v1992 = vpack.c.b16 %v1776, %v1774
    %v1993 = vpack.c.b16 %v1779, %v1777
    %v1994 = vpack.c.b16 %v1780, %v1778
    %v1995 = vpack.c.b16 %v1783, %v1781
    %v1996 = vpack.c.b16 %v1784, %v1782
    %v1997 = vpack.c.b16 %v1787, %v1785
    %v1998 = vpack.c.b16 %v1788, %v1786
    %v1999 = vpack.c.b16 %v1791, %v1789
    %v2000 = vpack.c.b16 %v1792, %v1790
    %v2001 = vpack.c.b16 %v1795, %v1793
    %v2002 = vpack.c.b16 %v1796, %v1794
    %v2003 = vpack.c.b16 %v1799, %v1797
    %v2004 = vpack.c.b16 %v1800, %v1798
    %v2005 = vpack.c.b16 %v1803, %v1801
    %v2006 = vpack.c.b16 %v1804, %v1802
    %v2007 = vpack.c.b16 %v1807, %v1805
    %v2008 = vpack.c.b16 %v1808, %v1806
    %v2009 = vpack.c.b16 %v1811, %v1809
    %v2010 = vpack.c.b16 %v1812, %v1810
    %v2011 = vpack.c.b16 %v1815, %v1813
    %v2012 = vpack.c.b16 %v1816, %v1814
    %v2013 = vpack.c.b16 %v1819, %v1817
    %v2014 = vpack.c.b16 %v1820, %v1818
    %v2015 = vpack.c.b16 %v1823, %v1821
    %v2016 = vpack.c.b16 %v1824, %v1822
    %v2017 = vpack.c.b16 %v1827, %v1825
    %v2018 = vpack.c.b16 %v1828, %v1826
    %v2019 = vpack.c.b16 %v1831, %v1829
    %v2020 = vpack.c.b16 %v1832, %v1830
    %v2021 = vpack.c.b16 %v1835, %v1833
    %v2022 = vpack.c.b16 %v1836, %v1834
    %v2023 = vpack.c.b16 %v1839, %v1837
    %v2024 = vpack.c.b16 %v1840, %v1838
    %v2025 = vpack.c.b16 %v1843, %v1841
    %v2026 = vpack.c.b16 %v1844, %v1842
    %v2027 = vpack.c.b16 %v1847, %v1845
    %v2028 = vpack.c.b16 %v1848, %v1846
    %v2029 = vpack.c.b16 %v1851, %v1849
    %v2030 = vpack.c.b16 %v1852, %v1850
    %v2031 = vpack.c.b16 %v1855, %v1853
    %v2032 = vpack.c.b16 %v1856, %v1854
    %v2033 = vpack.c.b16 %v1859, %v1857
    %v2034 = vpack.c.b16 %v1860, %v1858
    %v2035 = vpack.c.b16 %v1863, %v1861
    %v2036 = vpack.c.b16 %v1864, %v1862
    %v2037 = vpack.c.b16 %v1867, %v1865
    %v2038 = vpack.c.b16 %v1868, %v1866
    %v2039 = vpack.c.b16 %v1871, %v1869
    %v2040 = vpack.c.b16 %v1872, %v1870
    %v2041 = vpack.c.b16 %v1875, %v1873
    %v2042 = vpack.c.b16 %v1876, %v1874
    %v2043 = vpack.c.b16 %v1879, %v1877
    %v2044 = vpack.c.b16 %v1880, %v1878
    %v2045 = vpack.c.b16 %v1883, %v1881
    %v2046 = vpack.c.b16 %v1884, %v1882
    %v2047 = vpack.c.b16 %v1887, %v1885
    %v2048 = vpack.c.b16 %v1888, %v1886
    %2209 = vmatprep.subr.bf16.mxu0 %v1890
    %2210 = vmatpush1.bf16.msra.mxu0 %v1889
    %2211 = vmatprep.subr.bf16.mxu0 %v1892
    %2212 = vmatpush1.bf16.msra.mxu0 %v1891
    %2213 = vmatprep.subr.bf16.mxu0 %v1894
    %2214 = vmatpush1.bf16.msra.mxu0 %v1893
    %2215 = vmatprep.subr.bf16.mxu0 %v1896
    %2216 = vmatpush1.bf16.msra.mxu0 %v1895
    %2217 = vmatprep.subr.bf16.mxu0 %v1898
    %2218 = vmatpush1.bf16.msra.mxu0 %v1897
    %2219 = vmatprep.subr.bf16.mxu0 %v1900
    %2220 = vmatpush1.bf16.msra.mxu0 %v1899
    %2221 = vmatprep.subr.bf16.mxu0 %v1902
    %2222 = vmatpush1.bf16.msra.mxu0 %v1901
    %2223 = vmatprep.subr.bf16.mxu0 %v1904
    %2224 = vmatpush1.bf16.msra.mxu0 %v1903
    %2225 = vmatprep.subr.bf16.mxu0 %v1906
    %2226 = vmatpush1.bf16.msra.mxu0 %v1905
    %2227 = vmatprep.subr.bf16.mxu0 %v1908
    %2228 = vmatpush1.bf16.msra.mxu0 %v1907
    %2229 = vmatprep.subr.bf16.mxu0 %v1910
    %2230 = vmatpush1.bf16.msra.mxu0 %v1909
    %2231 = vmatprep.subr.bf16.mxu0 %v1912
    %2232 = vmatpush1.bf16.msra.mxu0 %v1911
    %2233 = vmatprep.subr.bf16.mxu0 %v1914
    %2234 = vmatpush1.bf16.msra.mxu0 %v1913
    %2235 = vmatprep.subr.bf16.mxu0 %v1916
    %2236 = vmatpush1.bf16.msra.mxu0 %v1915
    %2237 = vmatprep.subr.bf16.mxu0 %v1918
    %2238 = vmatpush1.bf16.msra.mxu0 %v1917
    %2239 = vmatprep.subr.bf16.mxu0 %v1920
    %2240 = vmatpush1.bf16.msra.mxu0 %v1919
    %2241 = vmatprep.mubr.bf16.mxu0 %v1389
    %2242 = vmatmul.mubr.bf16.gmra.mrb[0].mxu0 %v1388
    %v2243 = vpop.f32.mrb[0].mxu0
    %v2244 = vadd.f32 %v1402, %v2243
    %v2245 = vpop.f32.mrb[0].mxu0
    %v2246 = vadd.f32 %v1406, %v2245
    %v2247 = vpop.f32.mrb[0].mxu0
    %v2248 = vadd.f32 %v1402, %v2247
    %v2249 = vpop.f32.mrb[0].mxu0
    %v2250 = vadd.f32 %v1406, %v2249
    %2251 = vdwg.mxu0
    %2252 = vmatprep.subr.bf16.mxu0 %v1922
    %2253 = vmatpush1.bf16.msra.mxu0 %v1921
    %2254 = vmatprep.subr.bf16.mxu0 %v1924
    %2255 = vmatpush1.bf16.msra.mxu0 %v1923
    %2256 = vmatprep.subr.bf16.mxu0 %v1926
    %2257 = vmatpush1.bf16.msra.mxu0 %v1925
    %2258 = vmatprep.subr.bf16.mxu0 %v1928
    %2259 = vmatpush1.bf16.msra.mxu0 %v1927
    %2260 = vmatprep.subr.bf16.mxu0 %v1930
    %2261 = vmatpush1.bf16.msra.mxu0 %v1929
    %2262 = vmatprep.subr.bf16.mxu0 %v1932
    %2263 = vmatpush1.bf16.msra.mxu0 %v1931
    %2264 = vmatprep.subr.bf16.mxu0 %v1934
    %2265 = vmatpush1.bf16.msra.mxu0 %v1933
    %2266 = vmatprep.subr.bf16.mxu0 %v1936
    %2267 = vmatpush1.bf16.msra.mxu0 %v1935
    %2268 = vmatprep.subr.bf16.mxu0 %v1938
    %2269 = vmatpush1.bf16.msra.mxu0 %v1937
    %2270 = vmatprep.subr.bf16.mxu0 %v1940
    %2271 = vmatpush1.bf16.msra.mxu0 %v1939
    %2272 = vmatprep.subr.bf16.mxu0 %v1942
    %2273 = vmatpush1.bf16.msra.mxu0 %v1941
    %2274 = vmatprep.subr.bf16.mxu0 %v1944
    %2275 = vmatpush1.bf16.msra.mxu0 %v1943
    %2276 = vmatprep.subr.bf16.mxu0 %v1946
    %2277 = vmatpush1.bf16.msra.mxu0 %v1945
    %2278 = vmatprep.subr.bf16.mxu0 %v1948
    %2279 = vmatpush1.bf16.msra.mxu0 %v1947
    %2280 = vmatprep.subr.bf16.mxu0 %v1950
    %2281 = vmatpush1.bf16.msra.mxu0 %v1949
    %2282 = vmatprep.subr.bf16.mxu0 %v1952
    %2283 = vmatpush1.bf16.msra.mxu0 %v1951
    %2284 = vmatprep.mubr.bf16.mxu0 %v1391
    %2285 = vmatmul.mubr.bf16.gmra.mrb[0].mxu0 %v1390
    %v2286 = vpop.f32.mrb[0].mxu0
    %v2287 = vadd.f32 %v2244, %v2286
    %v2288 = vpop.f32.mrb[0].mxu0
    %v2289 = vadd.f32 %v2246, %v2288
    %v2290 = vpop.f32.mrb[0].mxu0
    %v2291 = vadd.f32 %v2248, %v2290
    %v2292 = vpop.f32.mrb[0].mxu0
    %v2293 = vadd.f32 %v2250, %v2292
    %2294 = vdwg.mxu0
    %2295 = vmatprep.subr.bf16.mxu0 %v1954
    %2296 = vmatpush1.bf16.msra.mxu0 %v1953
    %2297 = vmatprep.subr.bf16.mxu0 %v1956
    %2298 = vmatpush1.bf16.msra.mxu0 %v1955
    %2299 = vmatprep.subr.bf16.mxu0 %v1958
    %2300 = vmatpush1.bf16.msra.mxu0 %v1957
    %2301 = vmatprep.subr.bf16.mxu0 %v1960
    %2302 = vmatpush1.bf16.msra.mxu0 %v1959
    %2303 = vmatprep.subr.bf16.mxu0 %v1962
    %2304 = vmatpush1.bf16.msra.mxu0 %v1961
    %2305 = vmatprep.subr.bf16.mxu0 %v1964
    %2306 = vmatpush1.bf16.msra.mxu0 %v1963
    %2307 = vmatprep.subr.bf16.mxu0 %v1966
    %2308 = vmatpush1.bf16.msra.mxu0 %v1965
    %2309 = vmatprep.subr.bf16.mxu0 %v1968
    %2310 = vmatpush1.bf16.msra.mxu0 %v1967
    %2311 = vmatprep.subr.bf16.mxu0 %v1970
    %2312 = vmatpush1.bf16.msra.mxu0 %v1969
    %2313 = vmatprep.subr.bf16.mxu0 %v1972
    %2314 = vmatpush1.bf16.msra.mxu0 %v1971
    %2315 = vmatprep.subr.bf16.mxu0 %v1974
    %2316 = vmatpush1.bf16.msra.mxu0 %v1973
    %2317 = vmatprep.subr.bf16.mxu0 %v1976
    %2318 = vmatpush1.bf16.msra.mxu0 %v1975
    %2319 = vmatprep.subr.bf16.mxu0 %v1978
    %2320 = vmatpush1.bf16.msra.mxu0 %v1977
    %2321 = vmatprep.subr.bf16.mxu0 %v1980
    %2322 = vmatpush1.bf16.msra.mxu0 %v1979
    %2323 = vmatprep.subr.bf16.mxu0 %v1982
    %2324 = vmatpush1.bf16.msra.mxu0 %v1981
    %2325 = vmatprep.subr.bf16.mxu0 %v1984
    %2326 = vmatpush1.bf16.msra.mxu0 %v1983
    %2327 = vmatprep.mubr.bf16.mxu0 %v1393
    %2328 = vmatmul.mubr.bf16.gmra.mrb[0].mxu0 %v1392
    %v2329 = vpop.f32.mrb[0].mxu0
    %v2330 = vadd.f32 %v2287, %v2329
    %v2331 = vpop.f32.mrb[0].mxu0
    %v2332 = vadd.f32 %v2289, %v2331
    %v2333 = vpop.f32.mrb[0].mxu0
    %v2334 = vadd.f32 %v2291, %v2333
    %v2335 = vpop.f32.mrb[0].mxu0
    %v2336 = vadd.f32 %v2293, %v2335
    %2337 = vdwg.mxu0
    %2338 = vmatprep.subr.bf16.mxu0 %v1986
    %2339 = vmatpush1.bf16.msra.mxu0 %v1985
    %2340 = vmatprep.subr.bf16.mxu0 %v1988
    %2341 = vmatpush1.bf16.msra.mxu0 %v1987
    %2342 = vmatprep.subr.bf16.mxu0 %v1990
    %2343 = vmatpush1.bf16.msra.mxu0 %v1989
    %2344 = vmatprep.subr.bf16.mxu0 %v1992
    %2345 = vmatpush1.bf16.msra.mxu0 %v1991
    %2346 = vmatprep.subr.bf16.mxu0 %v1994
    %2347 = vmatpush1.bf16.msra.mxu0 %v1993
    %2348 = vmatprep.subr.bf16.mxu0 %v1996
    %2349 = vmatpush1.bf16.msra.mxu0 %v1995
    %2350 = vmatprep.subr.bf16.mxu0 %v1998
    %2351 = vmatpush1.bf16.msra.mxu0 %v1997
    %2352 = vmatprep.subr.bf16.mxu0 %v2000
    %2353 = vmatpush1.bf16.msra.mxu0 %v1999
    %2354 = vmatprep.subr.bf16.mxu0 %v2002
    %2355 = vmatpush1.bf16.msra.mxu0 %v2001
    %2356 = vmatprep.subr.bf16.mxu0 %v2004
    %2357 = vmatpush1.bf16.msra.mxu0 %v2003
    %2358 = vmatprep.subr.bf16.mxu0 %v2006
    %2359 = vmatpush1.bf16.msra.mxu0 %v2005
    %2360 = vmatprep.subr.bf16.mxu0 %v2008
    %2361 = vmatpush1.bf16.msra.mxu0 %v2007
    %2362 = vmatprep.subr.bf16.mxu0 %v2010
    %2363 = vmatpush1.bf16.msra.mxu0 %v2009
    %2364 = vmatprep.subr.bf16.mxu0 %v2012
    %2365 = vmatpush1.bf16.msra.mxu0 %v2011
    %2366 = vmatprep.subr.bf16.mxu0 %v2014
    %2367 = vmatpush1.bf16.msra.mxu0 %v2013
    %2368 = vmatprep.subr.bf16.mxu0 %v2016
    %2369 = vmatpush1.bf16.msra.mxu0 %v2015
    %2370 = vmatprep.mubr.bf16.mxu0 %v1395
    %2371 = vmatmul.mubr.bf16.gmra.mrb[0].mxu0 %v1394
    %v2372 = vpop.f32.mrb[0].mxu0
    %v2373 = vadd.f32 %v2330, %v2372
    %v2374 = vpop.f32.mrb[0].mxu0
    %v2375 = vadd.f32 %v2332, %v2374
    %v2376 = vpop.f32.mrb[0].mxu0
    %v2377 = vadd.f32 %v2334, %v2376
    %v2378 = vpop.f32.mrb[0].mxu0
    %v2379 = vadd.f32 %v2336, %v2378
    %2380 = vdwg.mxu0
    %2381 = vmatprep.subr.bf16.mxu0 %v2018
    %2382 = vmatpush1.bf16.msra.mxu0 %v2017
    %2383 = vmatprep.subr.bf16.mxu0 %v2020
    %2384 = vmatpush1.bf16.msra.mxu0 %v2019
    %2385 = vmatprep.subr.bf16.mxu0 %v2022
    %2386 = vmatpush1.bf16.msra.mxu0 %v2021
    %2387 = vmatprep.subr.bf16.mxu0 %v2024
    %2388 = vmatpush1.bf16.msra.mxu0 %v2023
    %2389 = vmatprep.subr.bf16.mxu0 %v2026
    %2390 = vmatpush1.bf16.msra.mxu0 %v2025
    %2391 = vmatprep.subr.bf16.mxu0 %v2028
    %2392 = vmatpush1.bf16.msra.mxu0 %v2027
    %2393 = vmatprep.subr.bf16.mxu0 %v2030
    %2394 = vmatpush1.bf16.msra.mxu0 %v2029
    %2395 = vmatprep.subr.bf16.mxu0 %v2032
    %2396 = vmatpush1.bf16.msra.mxu0 %v2031
    %2397 = vmatprep.subr.bf16.mxu0 %v2034
    %2398 = vmatpush1.bf16.msra.mxu0 %v2033
    %2399 = vmatprep.subr.bf16.mxu0 %v2036
    %2400 = vmatpush1.bf16.msra.mxu0 %v2035
    %2401 = vmatprep.subr.bf16.mxu0 %v2038
    %2402 = vmatpush1.bf16.msra.mxu0 %v2037
    %2403 = vmatprep.subr.bf16.mxu0 %v2040
    %2404 = vmatpush1.bf16.msra.mxu0 %v2039
    %2405 = vmatprep.subr.bf16.mxu0 %v2042
    %2406 = vmatpush1.bf16.msra.mxu0 %v2041
    %2407 = vmatprep.subr.bf16.mxu0 %v2044
    %2408 = vmatpush1.bf16.msra.mxu0 %v2043
    %2409 = vmatprep.subr.bf16.mxu0 %v2046
    %2410 = vmatpush1.bf16.msra.mxu0 %v2045
    %2411 = vmatprep.subr.bf16.mxu0 %v2048
    %2412 = vmatpush1.bf16.msra.mxu0 %v2047
    %2413 = vmatprep.mubr.bf16.mxu0 %v1397
    %2414 = vmatmul.mubr.bf16.gmra.mrb[0].mxu0 %v1396
    %v2415 = vpop.f32.mrb[0].mxu0
    %v2416 = vadd.f32 %v2373, %v2415
    %v2417 = vpop.f32.mrb[0].mxu0
    %v2418 = vadd.f32 %v2375, %v2417
    %v2419 = vpop.f32.mrb[0].mxu0
    %v2420 = vadd.f32 %v2377, %v2419
    %v2421 = vpop.f32.mrb[0].mxu0
    %v2422 = vadd.f32 %v2379, %v2421
    %2423 = vdwg.mxu0
    %v2424 = vmax.f32 %v2416, 0.0
    %v2425 = vmax.f32 %v2418, 0.0
    %v2426 = vmax.f32 %v2420, 0.0
    %v2427 = vmax.f32 %v2422, 0.0
    %v2428 = vpack.c.bf16 %v2426, %v2424
    %v2429 = vpack.c.bf16 %v2427, %v2425
    %v2431 = vlaneseq
    %v2432 = vshrl.u32 %v2431, 7
    %v2433 = vsub.s32 0, %v2432
    %v2434 = vrot.slane %v1370, %v2433
    %v2468 = vunpack.c.l.b16 %v1338
    %v2469 = vunpack.c.l.b16 %v1339
    %v2470 = vunpack.c.l.b16 %v1340
    %v2471 = vunpack.c.l.b16 %v1341
    %v2472 = vunpack.c.l.b16 %v1342
    %v2473 = vunpack.c.l.b16 %v1343
    %v2474 = vunpack.c.l.b16 %v1344
    %v2475 = vunpack.c.l.b16 %v1345
    %v2476 = vunpack.c.l.b16 %v1346
    %v2477 = vunpack.c.l.b16 %v1347
    %v2478 = vunpack.c.l.b16 %v1348
    %v2479 = vunpack.c.l.b16 %v1349
    %v2480 = vunpack.c.l.b16 %v1350
    %v2481 = vunpack.c.l.b16 %v1351
    %v2482 = vunpack.c.l.b16 %v1352
    %v2483 = vunpack.c.l.b16 %v1353
    %v2484 = vunpack.c.l.b16 %v1354
    %v2485 = vunpack.c.l.b16 %v1355
    %v2486 = vunpack.c.l.b16 %v1356
    %v2487 = vunpack.c.l.b16 %v1357
    %v2488 = vunpack.c.l.b16 %v1358
    %v2489 = vunpack.c.l.b16 %v1359
    %v2490 = vunpack.c.l.b16 %v1360
    %v2491 = vunpack.c.l.b16 %v1361
    %v2492 = vunpack.c.l.b16 %v1362
    %v2493 = vunpack.c.l.b16 %v1363
    %v2494 = vunpack.c.l.b16 %v1364
    %v2495 = vunpack.c.l.b16 %v1365
    %v2496 = vunpack.c.l.b16 %v1366
    %v2497 = vunpack.c.l.b16 %v1367
    %v2498 = vunpack.c.l.b16 %v1368
    %v2499 = vunpack.c.l.b16 %v1369
    %v2500 = vpack.c.b16 %v2469, %v2468
    %v2501 = vpack.c.b16 %v2471, %v2470
    %v2502 = vpack.c.b16 %v2473, %v2472
    %v2503 = vpack.c.b16 %v2475, %v2474
    %v2504 = vpack.c.b16 %v2477, %v2476
    %v2505 = vpack.c.b16 %v2479, %v2478
    %v2506 = vpack.c.b16 %v2481, %v2480
    %v2507 = vpack.c.b16 %v2483, %v2482
    %v2508 = vpack.c.b16 %v2485, %v2484
    %v2509 = vpack.c.b16 %v2487, %v2486
    %v2510 = vpack.c.b16 %v2489, %v2488
    %v2511 = vpack.c.b16 %v2491, %v2490
    %v2512 = vpack.c.b16 %v2493, %v2492
    %v2513 = vpack.c.b16 %v2495, %v2494
    %v2514 = vpack.c.b16 %v2497, %v2496
    %v2515 = vpack.c.b16 %v2499, %v2498
    %2532 = vmatprep.subr.bf16.mxu0 0
    %2533 = vmatpush1.bf16.msra.mxu0 %v2500
    %2534 = vmatprep.subr.bf16.mxu0 0
    %2535 = vmatpush1.bf16.msra.mxu0 %v2501
    %2536 = vmatprep.subr.bf16.mxu0 0
    %2537 = vmatpush1.bf16.msra.mxu0 %v2502
    %2538 = vmatprep.subr.bf16.mxu0 0
    %2539 = vmatpush1.bf16.msra.mxu0 %v2503
    %2540 = vmatprep.subr.bf16.mxu0 0
    %2541 = vmatpush1.bf16.msra.mxu0 %v2504
    %2542 = vmatprep.subr.bf16.mxu0 0
    %2543 = vmatpush1.bf16.msra.mxu0 %v2505
    %2544 = vmatprep.subr.bf16.mxu0 0
    %2545 = vmatpush1.bf16.msra.mxu0 %v2506
    %2546 = vmatprep.subr.bf16.mxu0 0
    %2547 = vmatpush1.bf16.msra.mxu0 %v2507
    %2548 = vmatprep.subr.bf16.mxu0 0
    %2549 = vmatpush1.bf16.msra.mxu0 %v2508
    %2550 = vmatprep.subr.bf16.mxu0 0
    %2551 = vmatpush1.bf16.msra.mxu0 %v2509
    %2552 = vmatprep.subr.bf16.mxu0 0
    %2553 = vmatpush1.bf16.msra.mxu0 %v2510
    %2554 = vmatprep.subr.bf16.mxu0 0
    %2555 = vmatpush1.bf16.msra.mxu0 %v2511
    %2556 = vmatprep.subr.bf16.mxu0 0
    %2557 = vmatpush1.bf16.msra.mxu0 %v2512
    %2558 = vmatprep.subr.bf16.mxu0 0
    %2559 = vmatpush1.bf16.msra.mxu0 %v2513
    %2560 = vmatprep.subr.bf16.mxu0 0
    %2561 = vmatpush1.bf16.msra.mxu0 %v2514
    %2562 = vmatprep.subr.bf16.mxu0 0
    %2563 = vmatpush1.bf16.msra.mxu0 %v2515
    %2564 = vmatprep.mubr.bf16.mxu0 %v2429
    %2565 = vmatmul.mubr.bf16.gmra.mrb[0].mxu0 %v2428
    %v2566 = vpop.f32.mrb[0].mxu0
    %v2567 = vadd.f32 %v2434, %v2566
    %v2568 = vpop.f32.mrb[0].mxu0
    %v2569 = vpop.f32.mrb[0].mxu0
    %v2570 = vadd.f32 %v2434, %v2569
    %v2571 = vpop.f32.mrb[0].mxu0
    %2572 = vdwg.mxu0
    %v2573 = vmax.f32 %v2567, 0.0
    %v2574 = vmax.f32 %v2570, 0.0
    %v2575 = vpack.c.bf16 %v2574, %v2573
    %v2577 = vlaneseq
    %v2578 = vshrl.u32 %v2577, 7
    %v2579 = vsub.s32 0, %v2578
    %v2580 = vrot.slane %v1387, %v2579
    %v2598 = vunpack.c.l.b16 %v1371
    %v2599 = vunpack.c.l.b16 %v1372
    %v2600 = vunpack.c.l.b16 %v1373
    %v2601 = vunpack.c.l.b16 %v1374
    %v2602 = vunpack.c.l.b16 %v1375
    %v2603 = vunpack.c.l.b16 %v1376
    %v2604 = vunpack.c.l.b16 %v1377
    %v2605 = vunpack.c.l.b16 %v1378
    %v2606 = vunpack.c.l.b16 %v1379
    %v2607 = vunpack.c.l.b16 %v1380
    %v2608 = vunpack.c.l.b16 %v1381
    %v2609 = vunpack.c.l.b16 %v1382
    %v2610 = vunpack.c.l.b16 %v1383
    %v2611 = vunpack.c.l.b16 %v1384
    %v2612 = vunpack.c.l.b16 %v1385
    %v2613 = vunpack.c.l.b16 %v1386
    %v2614 = vpack.c.b16 %v2599, %v2598
    %v2615 = vpack.c.b16 %v2601, %v2600
    %v2616 = vpack.c.b16 %v2603, %v2602
    %v2617 = vpack.c.b16 %v2605, %v2604
    %v2618 = vpack.c.b16 %v2607, %v2606
    %v2619 = vpack.c.b16 %v2609, %v2608
    %v2620 = vpack.c.b16 %v2611, %v2610
    %v2621 = vpack.c.b16 %v2613, %v2612
    %2630 = vmatprep.subr.bf16.mxu0 0
    %2631 = vmatpush1.bf16.msra.mxu0 %v2614
    %2632 = vmatprep.subr.bf16.mxu0 0
    %2633 = vmatpush1.bf16.msra.mxu0 %v2615
    %2634 = vmatprep.subr.bf16.mxu0 0
    %2635 = vmatpush1.bf16.msra.mxu0 %v2616
    %2636 = vmatprep.subr.bf16.mxu0 0
    %2637 = vmatpush1.bf16.msra.mxu0 %v2617
    %2638 = vmatprep.subr.bf16.mxu0 0
    %2639 = vmatpush1.bf16.msra.mxu0 %v2618
    %2640 = vmatprep.subr.bf16.mxu0 0
    %2641 = vmatpush1.bf16.msra.mxu0 %v2619
    %2642 = vmatprep.subr.bf16.mxu0 0
    %2643 = vmatpush1.bf16.msra.mxu0 %v2620
    %2644 = vmatprep.subr.bf16.mxu0 0
    %2645 = vmatpush1.bf16.msra.mxu0 %v2621
    %2646 = vmatprep.subr.bf16.mxu0 0
    %2647 = vmatpush1.bf16.msra.mxu0 0
    %2648 = vmatprep.subr.bf16.mxu0 0
    %2649 = vmatpush1.bf16.msra.mxu0 0
    %2650 = vmatprep.subr.bf16.mxu0 0
    %2651 = vmatpush1.bf16.msra.mxu0 0
    %2652 = vmatprep.subr.bf16.mxu0 0
    %2653 = vmatpush1.bf16.msra.mxu0 0
    %2654 = vmatprep.subr.bf16.mxu0 0
    %2655 = vmatpush1.bf16.msra.mxu0 0
    %2656 = vmatprep.subr.bf16.mxu0 0
    %2657 = vmatpush1.bf16.msra.mxu0 0
    %2658 = vmatprep.subr.bf16.mxu0 0
    %2659 = vmatpush1.bf16.msra.mxu0 0
    %2660 = vmatprep.subr.bf16.mxu0 0
    %2661 = vmatpush1.bf16.msra.mxu0 0
    %2662 = vmatprep.mubr.bf16.mxu0 0
    %2663 = vmatmul.mubr.bf16.gmra.mrb[0].mxu0 %v2575
    %v2664 = vpop.f32.mrb[0].mxu0
    %v2665 = vadd.f32 %v2580, %v2664
    %v2666 = vpop.f32.mrb[0].mxu0
    %v2667 = vpop.f32.mrb[0].mxu0
    %v2668 = vadd.f32 %v2580, %v2667
    %v2669 = vpop.f32.mrb[0].mxu0
    %2670 = vdwg.mxu0
    %2671 = vst [vmem:[#allocation11] sm:$0xff] %v2665
    %2672 = vst [vmem:[#allocation12] sm:$0xff] %v2668
    // Predicated region
    $region54: #{tpu_custom_call.1} parent=1 // pred_check
      _
    $region55: #{tpu_custom_call.1} parent=1 // pred_check_branch
      %2674 = sbr.rel (0) target = $region57
    $region56: #{tpu_custom_call.1} parent=1 // pred_region
      %s2676 = ssub.s32 128, 128
      %2677 = vsyncadd [#allocation4], %s2676
      %s2679 = sshll.u32 [#allocation11], 4
      %s2680 = int_to_ptr.vmem [resolvable:$true] %s2679
      %2682 = dma.vmem_to_hbm [thread:$0]  %s2680, 128, %s8, [#allocation4]
    $region57: #{tpu_custom_call.1} parent=1 // pred_fallthru
      _
    // Predicated region
    $region58: #{tpu_custom_call.1} parent=1 // pred_check
      _
    $region59: #{tpu_custom_call.1} parent=1 // pred_check_branch
      %2684 = sbr.rel (0) target = $region61
    $region60: #{tpu_custom_call.1} parent=1 // pred_region
      %s2686 = ssub.s32 128, 128
      %2687 = vsyncadd [#allocation13], %s2686
      %s2689 = sshll.u32 [#allocation12], 4
      %s2690 = int_to_ptr.vmem [resolvable:$true] %s2689
      %2692 = dma.vmem_to_hbm [thread:$0]  %s2690, 128, %s9, [#allocation13]
    $region61: #{tpu_custom_call.1} parent=1 // pred_fallthru
      _
    // Predicated region
    $region62: #{tpu_custom_call.1} parent=1 // pred_check
      _
    $region63: #{tpu_custom_call.1} parent=1 // pred_check_branch
      %2694 = sbr.rel (0) target = $region65
    $region64: #{tpu_custom_call.1} parent=1 // pred_region
      %2695 = dma.done [#allocation4], 128
    $region65: #{tpu_custom_call.1} parent=1 // pred_fallthru
      _
    // Predicated region
    $region66: #{tpu_custom_call.1} parent=1 // pred_check
      _
    $region67: #{tpu_custom_call.1} parent=1 // pred_check_branch
      %2697 = sbr.rel (0) target = $region69
    $region68: #{tpu_custom_call.1} parent=1 // pred_region
      %2698 = dma.done [#allocation13], 128
    $region69: #{tpu_custom_call.1} parent=1 // pred_fallthru
      _
    %2699 = vsyncpa [#allocation3], 1
    %2700 = vsyncpa [#allocation6], 1
    %2701 = vsyncpa [#allocation9], 1
    %2702 = vsyncpa [#allocation4], 1
    %2703 = vsyncpa [#allocation13], 1

</llo_original>
